<compile_context>
chip_gen: v5e
topology: v5e:2x2
jax: 0.10.0
libtpu: 0.0.40
codegen_flags: <defaults>
</compile_context>

<pallas_src>
import functools

import jax
import jax.numpy as jnp
from jax.experimental import pallas as pl
from jax.experimental.pallas import tpu as pltpu


def _round_up(x, m):
    return (x + m - 1) // m * m


# --------------------------------------------------------------------------
# Pallas kernel: bi-interaction pooling + MLP + projection + sigmoid.
# Batch lives on the sublane axis; the streamed block keeps the natural
# (TB, F*D) layout so no HBM-side transpose is needed anywhere.
# --------------------------------------------------------------------------
def nfm_kernel(ev_ref,      # (TB, F*D) bf16  feat_emb * feat_value (storage dtype)
               first_ref,   # (TB, 1)   f32   first-order term + global bias
               w1_ref,      # (D,  H1)  f32   MLP layer-1 weight
               b1_ref,      # (1,  H1)
               w2_ref,      # (H1, H2)        MLP layer-2 weight
               b2_ref,      # (1,  H2)
               h_ref,       # (1,  H2)        final projection vector
               out_ref,     # (TB, 1)   f32   sigmoid output
               *, num_fields, emb_dim):
    F, D = num_fields, emb_dim

    # Bi-interaction pooling: 0.5 * ((sum_f x)^2 - sum_f x^2).
    # Single pass over the F fields: slice one (TB, D) field at a time out of
    # the bf16 block, upcast to f32 once, keep two f32 accumulators.
    x = ev_ref[:, 0:D].astype(jnp.float32)                       # (TB, D)
    sum_f = x
    sum_sq = x * x
    for f in range(1, F):
        x = ev_ref[:, f * D:(f + 1) * D].astype(jnp.float32)
        sum_f = sum_f + x
        sum_sq = sum_sq + x * x
    bi = 0.5 * (sum_f * sum_f - sum_sq)                          # (TB, D) f32

    # MLP (Linear -> ReLU, twice); f32 accumulation throughout.  MXU work is
    # negligible next to the HBM stream, so no layout tricks here.
    h1 = jnp.dot(bi, w1_ref[...], preferred_element_type=jnp.float32) + b1_ref[...]
    h1 = jnp.maximum(h1, 0.0)                                    # (TB, H1)
    h2 = jnp.dot(h1, w2_ref[...], preferred_element_type=jnp.float32) + b2_ref[...]
    h2 = jnp.maximum(h2, 0.0)                                    # (TB, H2)

    # Projection onto h: elementwise mul + lane reduce (rides the XLU slot).
    proj = jnp.sum(h2 * h_ref[...], axis=1, keepdims=True)       # (TB, 1)

    out_ref[...] = jax.nn.sigmoid(proj + first_ref[...])         # binary output


# --------------------------------------------------------------------------
# Wrapper: gathers / scale / first-order term stay as a single XLA fusion
# (writing the one streamed bf16 tensor), then the pallas_call over batch tiles.
# --------------------------------------------------------------------------
def nfm_forward(feat_index, feat_value, params, *, ev_buffer_bytes=4 << 20):
    B, F = feat_index.shape
    emb_table = params["emb_table"]                     # (num_feats, D)
    D = emb_table.shape[1]
    H1 = params["w1"].shape[1]
    H2 = params["w2"].shape[1]

    feat_value = feat_value.astype(jnp.float32)

    # --- XLA glue (single fusion): gathers + first-order term. ---
    fow = jnp.take(params["fow_table"], feat_index, axis=0)[..., 0]          # (B, F)
    first = (jnp.sum(feat_value * fow, axis=1, keepdims=True)
             + params["first_order_bias"][0, 0])                             # (B, 1)

    feat_emb = jnp.take(emb_table, feat_index, axis=0)                       # (B, F, D)
    # Natural layout, flattened (free: F, D already minor-contiguous) and
    # streamed in bf16 -- storage dtype only; the kernel accumulates in f32.
    ev = (feat_emb * feat_value[..., None]).reshape(B, F * D).astype(jnp.bfloat16)

    # --- Batch tile derived from a per-buffer VMEM budget (double-buffered). ---
    row_bytes = F * D * ev.dtype.itemsize
    tb_cap = max(128, (ev_buffer_bytes // row_bytes) // 128 * 128)
    pb_min = _round_up(B, 128)
    tb = min(tb_cap, pb_min)
    # Keep >= 2 grid steps when the batch allows it, so v7x's two TensorCores
    # both get a share of the "parallel" batch axis (single-TC chips unaffected).
    if pb_min // tb < 2 and pb_min >= 256:
        tb = _round_up(-(-pb_min // 2), 128)
    pb = _round_up(B, tb)

    pad = pb - B
    if pad:
        ev = jnp.pad(ev, ((0, pad), (0, 0)))
        first = jnp.pad(first, ((0, pad), (0, 0)))
    first = first.astype(jnp.float32)

    # Tiny resident params (constant index_map -> DMA'd once, stay resident).
    w1 = params["w1"].astype(jnp.float32)                 # (D, H1)
    b1 = params["b1"].reshape(1, H1).astype(jnp.float32)
    w2 = params["w2"].astype(jnp.float32)                 # (H1, H2)
    b2 = params["b2"].reshape(1, H2).astype(jnp.float32)
    hv = params["h"].reshape(1, H2).astype(jnp.float32)
    weight_bytes = 4 * (w1.size + b1.size + w2.size + b2.size + hv.size)

    # VMEM: double-buffered ev + first + out, resident weights (x2 buffers),
    # plus headroom for the f32 intermediates kept live inside the kernel.
    vmem_need = (2 * tb * row_bytes + 4 * tb * 4 + 2 * weight_bytes
                 + 6 * tb * max(D, H1, H2) * 4)
    vmem_limit = min(int(vmem_need) + (8 << 20), 48 << 20)

    cost = pl.CostEstimate(
        flops=int(pb * (4 * F * D + 4 * D + 2 * D * H1 + 2 * H1 * H2 + 3 * H2 + 4)),
        transcendentals=int(pb),
        bytes_accessed=int(ev.size * ev.dtype.itemsize + 2 * pb * 4 + weight_bytes),
    )

    def resident(shape):
        return pl.BlockSpec(shape, lambda i: (0, 0))

    out = pl.pallas_call(
        functools.partial(nfm_kernel, num_fields=F, emb_dim=D),
        out_shape=jax.ShapeDtypeStruct((pb, 1), jnp.float32),
        grid_spec=pltpu.PrefetchScalarGridSpec(
            num_scalar_prefetch=0,
            grid=(pb // tb,),
            in_specs=[
                pl.BlockSpec((tb, F * D), lambda i: (i, 0)),   # streamed embeddings
                pl.BlockSpec((tb, 1), lambda i: (i, 0)),       # first-order term
                resident((D, H1)),                             # w1
                resident((1, H1)),                             # b1
                resident((H1, H2)),                            # w2
                resident((1, H2)),                             # b2
                resident((1, H2)),                             # h
            ],
            out_specs=pl.BlockSpec((tb, 1), lambda i: (i, 0)),
        ),
        compiler_params=pltpu.CompilerParams(
            dimension_semantics=("parallel",),
            vmem_limit_bytes=vmem_limit),
        cost_estimate=cost,
    )(ev, first, w1, b1, w2, b2, hv)

    return out[:B]                                        # (B, 1)


# --------------------------------------------------------------------------
# Pure-JAX reference (silent sanity check).
# --------------------------------------------------------------------------
def nfm_reference(feat_index, feat_value, params):
    fow = jnp.take(params["fow_table"], feat_index, axis=0)[..., 0]
    first_order = jnp.sum(feat_value * fow, axis=1)
    feat_emb = jnp.take(params["emb_table"], feat_index, axis=0)
    ev = feat_emb * feat_value[..., None]
    s = jnp.sum(ev, axis=1)
    bi = 0.5 * (s * s - jnp.sum(ev * ev, axis=1))
    h1 = jnp.maximum(bi @ params["w1"] + params["b1"], 0.0)
    h2 = jnp.maximum(h1 @ params["w2"] + params["b2"], 0.0)
    proj = jnp.sum(h2 * params["h"], axis=1)
    logit = proj + first_order + params["first_order_bias"][0, 0]
    return jax.nn.sigmoid(logit)[:, None]


# --------------------------------------------------------------------------
# Deterministic parameter init (xavier-uniform style) — no checkpoint load.
# --------------------------------------------------------------------------
def init_params(key, num_feats, emb_dim, fc_dims):
    ks = jax.random.split(key, 8)

    def xavier(k, shape):
        fan_in, fan_out = shape[-2], shape[-1]
        limit = jnp.sqrt(6.0 / (fan_in + fan_out))
        return jax.random.uniform(k, shape, jnp.float32, -limit, limit)

    h1, h2 = fc_dims
    return {
        "fow_table": xavier(ks[0], (num_feats, 1)),
        "emb_table": xavier(ks[1], (num_feats, emb_dim)),
        "first_order_bias": jax.random.normal(ks[2], (1, 1), jnp.float32),
        "w1": xavier(ks[3], (emb_dim, h1)),
        "b1": jnp.zeros((1, h1), jnp.float32),
        "w2": xavier(ks[4], (h1, h2)),
        "b2": jnp.zeros((1, h2), jnp.float32),
        "h": xavier(ks[5], (1, h2)),
    }


if __name__ == "__main__":
    key = jax.random.PRNGKey(0)
    B, num_fields, emb_dim, num_feats = 8, 8, 16, 64
    fc_dims = [32, 32]

    k_idx, k_val, k_par = jax.random.split(key, 3)
    feat_index = jax.random.randint(k_idx, (B, num_fields), 0, num_feats, jnp.int32)
    feat_value = jax.random.uniform(k_val, (B, num_fields), jnp.float32)
    params = init_params(k_par, num_feats, emb_dim, fc_dims)

    out = jax.jit(nfm_forward)(feat_index, feat_value, params)
    out = jax.block_until_ready(out)

    ref = nfm_reference(feat_index, feat_value, params)
    assert out.shape == (B, 1)
    # bf16 embedding stream (f32 accumulation) -> slightly loosened tolerance.
    assert jnp.allclose(out, ref, atol=2e-2, rtol=2e-2)
    print("KERNEL_OK")
</pallas_src>

<mosaic_0001>
module attributes {stable_mosaic.version = 11 : i64} {
  func.func @nfm_kernel(%arg0: i32, %arg1: memref<128x128xbf16, #tpu.memory_space<vmem>>, %arg2: memref<128x1xf32, #tpu.memory_space<vmem>>, %arg3: memref<16x32xf32, #tpu.memory_space<vmem>>, %arg4: memref<1x32xf32, #tpu.memory_space<vmem>>, %arg5: memref<32x32xf32, #tpu.memory_space<vmem>>, %arg6: memref<1x32xf32, #tpu.memory_space<vmem>>, %arg7: memref<1x32xf32, #tpu.memory_space<vmem>>, %arg8: memref<128x1xf32, #tpu.memory_space<vmem>>) attributes {dimension_semantics = [#tpu.dimension_semantics<parallel>], iteration_bounds = array<i64: 1>, scalar_prefetch = 0 : i64, scratch_operands = 0 : i64, tpu.core_type = #tpu.core_type<tc>, window_params = [{transform_indices = @transform_0, window_bounds = array<i64: 128, 128>}, {transform_indices = @transform_1, window_bounds = array<i64: 128, 1>}, {pipeline_mode = #tpu.pipeline_mode<synchronous>, transform_indices = @transform_2, window_bounds = array<i64: 16, 32>}, {pipeline_mode = #tpu.pipeline_mode<synchronous>, transform_indices = @transform_3, window_bounds = array<i64: 1, 32>}, {pipeline_mode = #tpu.pipeline_mode<synchronous>, transform_indices = @transform_4, window_bounds = array<i64: 32, 32>}, {pipeline_mode = #tpu.pipeline_mode<synchronous>, transform_indices = @transform_5, window_bounds = array<i64: 1, 32>}, {pipeline_mode = #tpu.pipeline_mode<synchronous>, transform_indices = @transform_6, window_bounds = array<i64: 1, 32>}, {transform_indices = @transform_7, window_bounds = array<i64: 128, 1>}]} {
    %c0 = arith.constant 0 : index
    %c0_0 = arith.constant 0 : index
    %0 = vector.load %arg1[%c0, %c0_0] : memref<128x128xbf16, #tpu.memory_space<vmem>>, vector<128x16xbf16>
    %1 = arith.extf %0 : vector<128x16xbf16> to vector<128x16xf32>
    %2 = arith.mulf %1, %1 : vector<128x16xf32>
    %c0_1 = arith.constant 0 : index
    %c16 = arith.constant 16 : index
    %3 = vector.load %arg1[%c0_1, %c16] : memref<128x128xbf16, #tpu.memory_space<vmem>>, vector<128x16xbf16>
    %4 = arith.extf %3 : vector<128x16xbf16> to vector<128x16xf32>
    %5 = arith.addf %1, %4 : vector<128x16xf32>
    %6 = arith.mulf %4, %4 : vector<128x16xf32>
    %7 = arith.addf %2, %6 : vector<128x16xf32>
    %c0_2 = arith.constant 0 : index
    %c32 = arith.constant 32 : index
    %8 = vector.load %arg1[%c0_2, %c32] : memref<128x128xbf16, #tpu.memory_space<vmem>>, vector<128x16xbf16>
    %9 = arith.extf %8 : vector<128x16xbf16> to vector<128x16xf32>
    %10 = arith.addf %5, %9 : vector<128x16xf32>
    %11 = arith.mulf %9, %9 : vector<128x16xf32>
    %12 = arith.addf %7, %11 : vector<128x16xf32>
    %c0_3 = arith.constant 0 : index
    %c48 = arith.constant 48 : index
    %13 = vector.load %arg1[%c0_3, %c48] : memref<128x128xbf16, #tpu.memory_space<vmem>>, vector<128x16xbf16>
    %14 = arith.extf %13 : vector<128x16xbf16> to vector<128x16xf32>
    %15 = arith.addf %10, %14 : vector<128x16xf32>
    %16 = arith.mulf %14, %14 : vector<128x16xf32>
    %17 = arith.addf %12, %16 : vector<128x16xf32>
    %c0_4 = arith.constant 0 : index
    %c64 = arith.constant 64 : index
    %18 = vector.load %arg1[%c0_4, %c64] : memref<128x128xbf16, #tpu.memory_space<vmem>>, vector<128x16xbf16>
    %19 = arith.extf %18 : vector<128x16xbf16> to vector<128x16xf32>
    %20 = arith.addf %15, %19 : vector<128x16xf32>
    %21 = arith.mulf %19, %19 : vector<128x16xf32>
    %22 = arith.addf %17, %21 : vector<128x16xf32>
    %c0_5 = arith.constant 0 : index
    %c80 = arith.constant 80 : index
    %23 = vector.load %arg1[%c0_5, %c80] : memref<128x128xbf16, #tpu.memory_space<vmem>>, vector<128x16xbf16>
    %24 = arith.extf %23 : vector<128x16xbf16> to vector<128x16xf32>
    %25 = arith.addf %20, %24 : vector<128x16xf32>
    %26 = arith.mulf %24, %24 : vector<128x16xf32>
    %27 = arith.addf %22, %26 : vector<128x16xf32>
    %c0_6 = arith.constant 0 : index
    %c96 = arith.constant 96 : index
    %28 = vector.load %arg1[%c0_6, %c96] : memref<128x128xbf16, #tpu.memory_space<vmem>>, vector<128x16xbf16>
    %29 = arith.extf %28 : vector<128x16xbf16> to vector<128x16xf32>
    %30 = arith.addf %25, %29 : vector<128x16xf32>
    %31 = arith.mulf %29, %29 : vector<128x16xf32>
    %32 = arith.addf %27, %31 : vector<128x16xf32>
    %c0_7 = arith.constant 0 : index
    %c112 = arith.constant 112 : index
    %33 = vector.load %arg1[%c0_7, %c112] : memref<128x128xbf16, #tpu.memory_space<vmem>>, vector<128x16xbf16>
    %34 = arith.extf %33 : vector<128x16xbf16> to vector<128x16xf32>
    %35 = arith.addf %30, %34 : vector<128x16xf32>
    %36 = arith.mulf %34, %34 : vector<128x16xf32>
    %37 = arith.addf %32, %36 : vector<128x16xf32>
    %38 = arith.mulf %35, %35 : vector<128x16xf32>
    %39 = arith.subf %38, %37 : vector<128x16xf32>
    %cst = arith.constant 5.000000e-01 : f32
    %40 = vector.broadcast %cst : f32 to vector<128x16xf32>
    %41 = arith.mulf %40, %39 : vector<128x16xf32>
    %c0_8 = arith.constant 0 : index
    %c0_9 = arith.constant 0 : index
    %42 = vector.load %arg3[%c0_8, %c0_9] : memref<16x32xf32, #tpu.memory_space<vmem>>, vector<16x32xf32>
    %cst_10 = arith.constant dense<0.000000e+00> : vector<128x32xf32>
    %43 = tpu.matmul %41, %42, %cst_10 {dimension_numbers = #tpu.dot_dimension_numbers<[1], [0], [0], [1], [0, 0, 1, 1], [], []>} : vector<128x16xf32>, vector<16x32xf32>, vector<128x32xf32> -> vector<128x32xf32>
    %c0_11 = arith.constant 0 : index
    %c0_12 = arith.constant 0 : index
    %44 = vector.load %arg4[%c0_11, %c0_12] : memref<1x32xf32, #tpu.memory_space<vmem>>, vector<1x32xf32>
    %45 = vector.broadcast %44 : vector<1x32xf32> to vector<128x32xf32>
    %46 = arith.addf %43, %45 : vector<128x32xf32>
    %cst_13 = arith.constant 0.000000e+00 : f32
    %47 = vector.broadcast %cst_13 : f32 to vector<128x32xf32>
    %48 = arith.maximumf %46, %47 : vector<128x32xf32>
    %c0_14 = arith.constant 0 : index
    %c0_15 = arith.constant 0 : index
    %49 = vector.load %arg5[%c0_14, %c0_15] : memref<32x32xf32, #tpu.memory_space<vmem>>, vector<32x32xf32>
    %cst_16 = arith.constant dense<0.000000e+00> : vector<128x32xf32>
    %50 = tpu.matmul %48, %49, %cst_16 {dimension_numbers = #tpu.dot_dimension_numbers<[1], [0], [0], [1], [0, 0, 1, 1], [], []>} : vector<128x32xf32>, vector<32x32xf32>, vector<128x32xf32> -> vector<128x32xf32>
    %c0_17 = arith.constant 0 : index
    %c0_18 = arith.constant 0 : index
    %51 = vector.load %arg6[%c0_17, %c0_18] : memref<1x32xf32, #tpu.memory_space<vmem>>, vector<1x32xf32>
    %52 = vector.broadcast %51 : vector<1x32xf32> to vector<128x32xf32>
    %53 = arith.addf %50, %52 : vector<128x32xf32>
    %cst_19 = arith.constant 0.000000e+00 : f32
    %54 = vector.broadcast %cst_19 : f32 to vector<128x32xf32>
    %55 = arith.maximumf %53, %54 : vector<128x32xf32>
    %c0_20 = arith.constant 0 : index
    %c0_21 = arith.constant 0 : index
    %56 = vector.load %arg7[%c0_20, %c0_21] : memref<1x32xf32, #tpu.memory_space<vmem>>, vector<1x32xf32>
    %57 = vector.broadcast %56 : vector<1x32xf32> to vector<128x32xf32>
    %58 = arith.mulf %55, %57 : vector<128x32xf32>
    %cst_22 = arith.constant dense<0.000000e+00> : vector<128xf32>
    %59 = vector.multi_reduction <add>, %58, %cst_22 [1] : vector<128x32xf32> to vector<128xf32>
    %60 = vector.shape_cast %59 : vector<128xf32> to vector<128x1xf32>
    %c0_23 = arith.constant 0 : index
    %c0_24 = arith.constant 0 : index
    %61 = vector.load %arg2[%c0_23, %c0_24] : memref<128x1xf32, #tpu.memory_space<vmem>>, vector<128x1xf32>
    %62 = arith.addf %60, %61 : vector<128x1xf32>
    %63 = arith.negf %62 : vector<128x1xf32>
    %64 = math.exp %63 : vector<128x1xf32>
    %cst_25 = arith.constant 1.000000e+00 : f32
    %65 = vector.broadcast %cst_25 : f32 to vector<128x1xf32>
    %66 = arith.addf %65, %64 : vector<128x1xf32>
    %67 = arith.divf %65, %66 : vector<128x1xf32>
    %c0_26 = arith.constant 0 : index
    %c0_27 = arith.constant 0 : index
    %68 = vector.load %arg8[%c0_26, %c0_27] : memref<128x1xf32, #tpu.memory_space<vmem>>, vector<128x1xf32>
    tpu.vector_store %arg8[%c0_26, %c0_27], %67 {strides = array<i32>} : memref<128x1xf32, #tpu.memory_space<vmem>>, vector<128x1xf32>,
    return
  }
  func.func @transform_0(%arg0: i32) -> (i32, i32) {
    %c0_i32 = arith.constant 0 : i32
    %c0_i32_0 = arith.constant 0 : i32
    return %arg0, %c0_i32 : i32, i32
  }
  func.func @transform_1(%arg0: i32) -> (i32, i32) {
    %c0_i32 = arith.constant 0 : i32
    %c0_i32_0 = arith.constant 0 : i32
    return %arg0, %c0_i32 : i32, i32
  }
  func.func @transform_2(%arg0: i32) -> (i32, i32) {
    %c0_i32 = arith.constant 0 : i32
    %c0_i32_0 = arith.constant 0 : i32
    %c0_i32_1 = arith.constant 0 : i32
    return %c0_i32, %c0_i32_0 : i32, i32
  }
  func.func @transform_3(%arg0: i32) -> (i32, i32) {
    %c0_i32 = arith.constant 0 : i32
    %c0_i32_0 = arith.constant 0 : i32
    %c0_i32_1 = arith.constant 0 : i32
    return %c0_i32, %c0_i32_0 : i32, i32
  }
  func.func @transform_4(%arg0: i32) -> (i32, i32) {
    %c0_i32 = arith.constant 0 : i32
    %c0_i32_0 = arith.constant 0 : i32
    %c0_i32_1 = arith.constant 0 : i32
    return %c0_i32, %c0_i32_0 : i32, i32
  }
  func.func @transform_5(%arg0: i32) -> (i32, i32) {
    %c0_i32 = arith.constant 0 : i32
    %c0_i32_0 = arith.constant 0 : i32
    %c0_i32_1 = arith.constant 0 : i32
    return %c0_i32, %c0_i32_0 : i32, i32
  }
  func.func @transform_6(%arg0: i32) -> (i32, i32) {
    %c0_i32 = arith.constant 0 : i32
    %c0_i32_0 = arith.constant 0 : i32
    %c0_i32_1 = arith.constant 0 : i32
    return %c0_i32, %c0_i32_0 : i32, i32
  }
  func.func @transform_7(%arg0: i32) -> (i32, i32) {
    %c0_i32 = arith.constant 0 : i32
    %c0_i32_0 = arith.constant 0 : i32
    return %arg0, %c0_i32 : i32, i32
  }
}

</mosaic_0001>

<llo_original>
// kernel: nfm_forward.1
$region0: #{nfm_forward.1}
  #allocation0 [shape = 'u32[]', space=smem, size = 0x4, offset = 0x4, fixed_abs, tag = 'smem constant byte address 0x4 - core index']
  #allocation1 [shape = 'u32[72,128]{1,0:T(1,128)}', space=vmem, size = 0x9000, scoped, tag = 'internal scratch']
  %s0 = inlined_call_operand.vmem [shape: bf16[128,128], index: 0, kind: input, shape index: {}]
  %s1 = inlined_call_operand.vmem [shape: f32[128,1], index: 1, kind: input, shape index: {}]
  %s2 = inlined_call_operand.vmem [shape: f32[16,32], index: 2, kind: input, shape index: {}]
  %s3 = inlined_call_operand.vmem [shape: f32[1,32], index: 3, kind: input, shape index: {}]
  %s4 = inlined_call_operand.vmem [shape: f32[32,32], index: 4, kind: input, shape index: {}]
  %s5 = inlined_call_operand.vmem [shape: f32[1,32], index: 5, kind: input, shape index: {}]
  %s6 = inlined_call_operand.vmem [shape: f32[1,32], index: 6, kind: input, shape index: {}]
  %s7 = inlined_call_operand.vmem [shape: f32[128,1], index: 7, kind: output, shape index: {}]
  %s8 = sld [smem:[#allocation0]]
  $region38: #{nfm_forward.1} parent=0
    _
  %s10 = ssub.s32 1, %s8
  %s11 = scalar_select 0, %s10, %s8
  // Predicated region
  $region2: #{nfm_forward.1} parent=0 // pred_check
    _
  $region3: #{nfm_forward.1} parent=0 // pred_check_branch
    %13 = sbr.rel (0) target = $region5
  $region4: #{nfm_forward.1} parent=0 // pred_region
    _
  $region5: #{nfm_forward.1} parent=0 // pred_fallthru
    _
  // Predicated region
  $region6: #{nfm_forward.1} parent=0 // pred_check
    _
  $region7: #{nfm_forward.1} parent=0 // pred_check_branch
    %15 = sbr.rel (0) target = $region9
  $region8: #{nfm_forward.1} parent=0 // pred_region
    _
  $region9: #{nfm_forward.1} parent=0 // pred_fallthru
    _
  // Predicated region
  $region10: #{nfm_forward.1} parent=0 // pred_check
    _
  $region11: #{nfm_forward.1} parent=0 // pred_check_branch
    %17 = sbr.rel (0) target = $region13
  $region12: #{nfm_forward.1} parent=0 // pred_region
    _
  $region13: #{nfm_forward.1} parent=0 // pred_fallthru
    _
  // Predicated region
  $region14: #{nfm_forward.1} parent=0 // pred_check
    _
  $region15: #{nfm_forward.1} parent=0 // pred_check_branch
    %19 = sbr.rel (0) target = $region17
  $region16: #{nfm_forward.1} parent=0 // pred_region
    _
  $region17: #{nfm_forward.1} parent=0 // pred_fallthru
    _
  // Predicated region
  $region18: #{nfm_forward.1} parent=0 // pred_check
    _
  $region19: #{nfm_forward.1} parent=0 // pred_check_branch
    %21 = sbr.rel (0) target = $region21
  $region20: #{nfm_forward.1} parent=0 // pred_region
    _
  $region21: #{nfm_forward.1} parent=0 // pred_fallthru
    _
  // Predicated region
  $region22: #{nfm_forward.1} parent=0 // pred_check
    _
  $region23: #{nfm_forward.1} parent=0 // pred_check_branch
    %23 = sbr.rel (0) target = $region25
  $region24: #{nfm_forward.1} parent=0 // pred_region
    _
  $region25: #{nfm_forward.1} parent=0 // pred_fallthru
    _
  // Predicated region
  $region26: #{nfm_forward.1} parent=0 // pred_check
    _
  $region27: #{nfm_forward.1} parent=0 // pred_check_branch
    %25 = sbr.rel (0) target = $region29
  $region28: #{nfm_forward.1} parent=0 // pred_region
    _
  $region29: #{nfm_forward.1} parent=0 // pred_fallthru
    _
  %v26 = vld [vmem:[%s0] sm:$0xf]
  %v27 = vld [vmem:[%s0 + $0x4] sm:$0xf]
  %v28 = vld [vmem:[%s0 + $0x8] sm:$0xf]
  %v29 = vld [vmem:[%s0 + $0xc] sm:$0xf]
  %v30 = vld [vmem:[%s0 + $0x10] sm:$0xf]
  %v31 = vld [vmem:[%s0 + $0x14] sm:$0xf]
  %v32 = vld [vmem:[%s0 + $0x18] sm:$0xf]
  %v33 = vld [vmem:[%s0 + $0x1c] sm:$0xf]
  %v34 = vld [vmem:[%s0 + $0x20] sm:$0xf]
  %v35 = vld [vmem:[%s0 + $0x24] sm:$0xf]
  %v36 = vld [vmem:[%s0 + $0x28] sm:$0xf]
  %v37 = vld [vmem:[%s0 + $0x2c] sm:$0xf]
  %v38 = vld [vmem:[%s0 + $0x30] sm:$0xf]
  %v39 = vld [vmem:[%s0 + $0x34] sm:$0xf]
  %v40 = vld [vmem:[%s0 + $0x38] sm:$0xf]
  %v41 = vld [vmem:[%s0 + $0x3c] sm:$0xf]
  %v42 = vunpack.c.l.bf16 %v26
  %v43 = vunpack.c.l.bf16 %v27
  %v44 = vunpack.c.l.bf16 %v28
  %v45 = vunpack.c.l.bf16 %v29
  %v46 = vunpack.c.l.bf16 %v30
  %v47 = vunpack.c.l.bf16 %v31
  %v48 = vunpack.c.l.bf16 %v32
  %v49 = vunpack.c.l.bf16 %v33
  %v50 = vunpack.c.l.bf16 %v34
  %v51 = vunpack.c.l.bf16 %v35
  %v52 = vunpack.c.l.bf16 %v36
  %v53 = vunpack.c.l.bf16 %v37
  %v54 = vunpack.c.l.bf16 %v38
  %v55 = vunpack.c.l.bf16 %v39
  %v56 = vunpack.c.l.bf16 %v40
  %v57 = vunpack.c.l.bf16 %v41
  %v58 = vmul.f32 %v42, %v42
  %v59 = vmul.f32 %v43, %v43
  %v60 = vmul.f32 %v44, %v44
  %v61 = vmul.f32 %v45, %v45
  %v62 = vmul.f32 %v46, %v46
  %v63 = vmul.f32 %v47, %v47
  %v64 = vmul.f32 %v48, %v48
  %v65 = vmul.f32 %v49, %v49
  %v66 = vmul.f32 %v50, %v50
  %v67 = vmul.f32 %v51, %v51
  %v68 = vmul.f32 %v52, %v52
  %v69 = vmul.f32 %v53, %v53
  %v70 = vmul.f32 %v54, %v54
  %v71 = vmul.f32 %v55, %v55
  %v72 = vmul.f32 %v56, %v56
  %v73 = vmul.f32 %v57, %v57
  %90 = vrot.lane.b32.xlu0 %v42, 112
  %v91 = vpop.permute.xlu0 %90
  %92 = vrot.lane.b32.xlu0 %v43, 112
  %v93 = vpop.permute.xlu0 %92
  %94 = vrot.lane.b32.xlu0 %v44, 112
  %v95 = vpop.permute.xlu0 %94
  %96 = vrot.lane.b32.xlu0 %v45, 112
  %v97 = vpop.permute.xlu0 %96
  %98 = vrot.lane.b32.xlu0 %v46, 112
  %v99 = vpop.permute.xlu0 %98
  %100 = vrot.lane.b32.xlu0 %v47, 112
  %v101 = vpop.permute.xlu0 %100
  %102 = vrot.lane.b32.xlu0 %v48, 112
  %v103 = vpop.permute.xlu0 %102
  %104 = vrot.lane.b32.xlu0 %v49, 112
  %v105 = vpop.permute.xlu0 %104
  %106 = vrot.lane.b32.xlu0 %v50, 112
  %v107 = vpop.permute.xlu0 %106
  %108 = vrot.lane.b32.xlu0 %v51, 112
  %v109 = vpop.permute.xlu0 %108
  %110 = vrot.lane.b32.xlu0 %v52, 112
  %v111 = vpop.permute.xlu0 %110
  %112 = vrot.lane.b32.xlu0 %v53, 112
  %v113 = vpop.permute.xlu0 %112
  %114 = vrot.lane.b32.xlu0 %v54, 112
  %v115 = vpop.permute.xlu0 %114
  %116 = vrot.lane.b32.xlu0 %v55, 112
  %v117 = vpop.permute.xlu0 %116
  %118 = vrot.lane.b32.xlu0 %v56, 112
  %v119 = vpop.permute.xlu0 %118
  %120 = vrot.lane.b32.xlu0 %v57, 112
  %v121 = vpop.permute.xlu0 %120
  %v138 = vadd.f32 %v42, %v91
  %v139 = vadd.f32 %v43, %v93
  %v140 = vadd.f32 %v44, %v95
  %v141 = vadd.f32 %v45, %v97
  %v142 = vadd.f32 %v46, %v99
  %v143 = vadd.f32 %v47, %v101
  %v144 = vadd.f32 %v48, %v103
  %v145 = vadd.f32 %v49, %v105
  %v146 = vadd.f32 %v50, %v107
  %v147 = vadd.f32 %v51, %v109
  %v148 = vadd.f32 %v52, %v111
  %v149 = vadd.f32 %v53, %v113
  %v150 = vadd.f32 %v54, %v115
  %v151 = vadd.f32 %v55, %v117
  %v152 = vadd.f32 %v56, %v119
  %v153 = vadd.f32 %v57, %v121
  %170 = vrot.lane.b32.xlu0 %v58, 112
  %v171 = vpop.permute.xlu0 %170
  %172 = vrot.lane.b32.xlu0 %v59, 112
  %v173 = vpop.permute.xlu0 %172
  %174 = vrot.lane.b32.xlu0 %v60, 112
  %v175 = vpop.permute.xlu0 %174
  %176 = vrot.lane.b32.xlu0 %v61, 112
  %v177 = vpop.permute.xlu0 %176
  %178 = vrot.lane.b32.xlu0 %v62, 112
  %v179 = vpop.permute.xlu0 %178
  %180 = vrot.lane.b32.xlu0 %v63, 112
  %v181 = vpop.permute.xlu0 %180
  %182 = vrot.lane.b32.xlu0 %v64, 112
  %v183 = vpop.permute.xlu0 %182
  %184 = vrot.lane.b32.xlu0 %v65, 112
  %v185 = vpop.permute.xlu0 %184
  %186 = vrot.lane.b32.xlu0 %v66, 112
  %v187 = vpop.permute.xlu0 %186
  %188 = vrot.lane.b32.xlu0 %v67, 112
  %v189 = vpop.permute.xlu0 %188
  %190 = vrot.lane.b32.xlu0 %v68, 112
  %v191 = vpop.permute.xlu0 %190
  %192 = vrot.lane.b32.xlu0 %v69, 112
  %v193 = vpop.permute.xlu0 %192
  %194 = vrot.lane.b32.xlu0 %v70, 112
  %v195 = vpop.permute.xlu0 %194
  %196 = vrot.lane.b32.xlu0 %v71, 112
  %v197 = vpop.permute.xlu0 %196
  %198 = vrot.lane.b32.xlu0 %v72, 112
  %v199 = vpop.permute.xlu0 %198
  %200 = vrot.lane.b32.xlu0 %v73, 112
  %v201 = vpop.permute.xlu0 %200
  %v218 = vadd.f32 %v58, %v171
  %v219 = vadd.f32 %v59, %v173
  %v220 = vadd.f32 %v60, %v175
  %v221 = vadd.f32 %v61, %v177
  %v222 = vadd.f32 %v62, %v179
  %v223 = vadd.f32 %v63, %v181
  %v224 = vadd.f32 %v64, %v183
  %v225 = vadd.f32 %v65, %v185
  %v226 = vadd.f32 %v66, %v187
  %v227 = vadd.f32 %v67, %v189
  %v228 = vadd.f32 %v68, %v191
  %v229 = vadd.f32 %v69, %v193
  %v230 = vadd.f32 %v70, %v195
  %v231 = vadd.f32 %v71, %v197
  %v232 = vadd.f32 %v72, %v199
  %v233 = vadd.f32 %v73, %v201
  %234 = vrot.lane.b32.xlu0 %v42, 96
  %v235 = vpop.permute.xlu0 %234
  %236 = vrot.lane.b32.xlu0 %v43, 96
  %v237 = vpop.permute.xlu0 %236
  %238 = vrot.lane.b32.xlu0 %v44, 96
  %v239 = vpop.permute.xlu0 %238
  %240 = vrot.lane.b32.xlu0 %v45, 96
  %v241 = vpop.permute.xlu0 %240
  %242 = vrot.lane.b32.xlu0 %v46, 96
  %v243 = vpop.permute.xlu0 %242
  %244 = vrot.lane.b32.xlu0 %v47, 96
  %v245 = vpop.permute.xlu0 %244
  %246 = vrot.lane.b32.xlu0 %v48, 96
  %v247 = vpop.permute.xlu0 %246
  %248 = vrot.lane.b32.xlu0 %v49, 96
  %v249 = vpop.permute.xlu0 %248
  %250 = vrot.lane.b32.xlu0 %v50, 96
  %v251 = vpop.permute.xlu0 %250
  %252 = vrot.lane.b32.xlu0 %v51, 96
  %v253 = vpop.permute.xlu0 %252
  %254 = vrot.lane.b32.xlu0 %v52, 96
  %v255 = vpop.permute.xlu0 %254
  %256 = vrot.lane.b32.xlu0 %v53, 96
  %v257 = vpop.permute.xlu0 %256
  %258 = vrot.lane.b32.xlu0 %v54, 96
  %v259 = vpop.permute.xlu0 %258
  %260 = vrot.lane.b32.xlu0 %v55, 96
  %v261 = vpop.permute.xlu0 %260
  %262 = vrot.lane.b32.xlu0 %v56, 96
  %v263 = vpop.permute.xlu0 %262
  %264 = vrot.lane.b32.xlu0 %v57, 96
  %v265 = vpop.permute.xlu0 %264
  %v282 = vadd.f32 %v138, %v235
  %v283 = vadd.f32 %v139, %v237
  %v284 = vadd.f32 %v140, %v239
  %v285 = vadd.f32 %v141, %v241
  %v286 = vadd.f32 %v142, %v243
  %v287 = vadd.f32 %v143, %v245
  %v288 = vadd.f32 %v144, %v247
  %v289 = vadd.f32 %v145, %v249
  %v290 = vadd.f32 %v146, %v251
  %v291 = vadd.f32 %v147, %v253
  %v292 = vadd.f32 %v148, %v255
  %v293 = vadd.f32 %v149, %v257
  %v294 = vadd.f32 %v150, %v259
  %v295 = vadd.f32 %v151, %v261
  %v296 = vadd.f32 %v152, %v263
  %v297 = vadd.f32 %v153, %v265
  %298 = vrot.lane.b32.xlu0 %v58, 96
  %v299 = vpop.permute.xlu0 %298
  %300 = vrot.lane.b32.xlu0 %v59, 96
  %v301 = vpop.permute.xlu0 %300
  %302 = vrot.lane.b32.xlu0 %v60, 96
  %v303 = vpop.permute.xlu0 %302
  %304 = vrot.lane.b32.xlu0 %v61, 96
  %v305 = vpop.permute.xlu0 %304
  %306 = vrot.lane.b32.xlu0 %v62, 96
  %v307 = vpop.permute.xlu0 %306
  %308 = vrot.lane.b32.xlu0 %v63, 96
  %v309 = vpop.permute.xlu0 %308
  %310 = vrot.lane.b32.xlu0 %v64, 96
  %v311 = vpop.permute.xlu0 %310
  %312 = vrot.lane.b32.xlu0 %v65, 96
  %v313 = vpop.permute.xlu0 %312
  %314 = vrot.lane.b32.xlu0 %v66, 96
  %v315 = vpop.permute.xlu0 %314
  %316 = vrot.lane.b32.xlu0 %v67, 96
  %v317 = vpop.permute.xlu0 %316
  %318 = vrot.lane.b32.xlu0 %v68, 96
  %v319 = vpop.permute.xlu0 %318
  %320 = vrot.lane.b32.xlu0 %v69, 96
  %v321 = vpop.permute.xlu0 %320
  %322 = vrot.lane.b32.xlu0 %v70, 96
  %v323 = vpop.permute.xlu0 %322
  %324 = vrot.lane.b32.xlu0 %v71, 96
  %v325 = vpop.permute.xlu0 %324
  %326 = vrot.lane.b32.xlu0 %v72, 96
  %v327 = vpop.permute.xlu0 %326
  %328 = vrot.lane.b32.xlu0 %v73, 96
  %v329 = vpop.permute.xlu0 %328
  %v346 = vadd.f32 %v218, %v299
  %v347 = vadd.f32 %v219, %v301
  %v348 = vadd.f32 %v220, %v303
  %v349 = vadd.f32 %v221, %v305
  %v350 = vadd.f32 %v222, %v307
  %v351 = vadd.f32 %v223, %v309
  %v352 = vadd.f32 %v224, %v311
  %v353 = vadd.f32 %v225, %v313
  %v354 = vadd.f32 %v226, %v315
  %v355 = vadd.f32 %v227, %v317
  %v356 = vadd.f32 %v228, %v319
  %v357 = vadd.f32 %v229, %v321
  %v358 = vadd.f32 %v230, %v323
  %v359 = vadd.f32 %v231, %v325
  %v360 = vadd.f32 %v232, %v327
  %v361 = vadd.f32 %v233, %v329
  %362 = vrot.lane.b32.xlu0 %v42, 80
  %v363 = vpop.permute.xlu0 %362
  %364 = vrot.lane.b32.xlu0 %v43, 80
  %v365 = vpop.permute.xlu0 %364
  %366 = vrot.lane.b32.xlu0 %v44, 80
  %v367 = vpop.permute.xlu0 %366
  %368 = vrot.lane.b32.xlu0 %v45, 80
  %v369 = vpop.permute.xlu0 %368
  %370 = vrot.lane.b32.xlu0 %v46, 80
  %v371 = vpop.permute.xlu0 %370
  %372 = vrot.lane.b32.xlu0 %v47, 80
  %v373 = vpop.permute.xlu0 %372
  %374 = vrot.lane.b32.xlu0 %v48, 80
  %v375 = vpop.permute.xlu0 %374
  %376 = vrot.lane.b32.xlu0 %v49, 80
  %v377 = vpop.permute.xlu0 %376
  %378 = vrot.lane.b32.xlu0 %v50, 80
  %v379 = vpop.permute.xlu0 %378
  %380 = vrot.lane.b32.xlu0 %v51, 80
  %v381 = vpop.permute.xlu0 %380
  %382 = vrot.lane.b32.xlu0 %v52, 80
  %v383 = vpop.permute.xlu0 %382
  %384 = vrot.lane.b32.xlu0 %v53, 80
  %v385 = vpop.permute.xlu0 %384
  %386 = vrot.lane.b32.xlu0 %v54, 80
  %v387 = vpop.permute.xlu0 %386
  %388 = vrot.lane.b32.xlu0 %v55, 80
  %v389 = vpop.permute.xlu0 %388
  %390 = vrot.lane.b32.xlu0 %v56, 80
  %v391 = vpop.permute.xlu0 %390
  %392 = vrot.lane.b32.xlu0 %v57, 80
  %v393 = vpop.permute.xlu0 %392
  %v410 = vadd.f32 %v282, %v363
  %v411 = vadd.f32 %v283, %v365
  %v412 = vadd.f32 %v284, %v367
  %v413 = vadd.f32 %v285, %v369
  %v414 = vadd.f32 %v286, %v371
  %v415 = vadd.f32 %v287, %v373
  %v416 = vadd.f32 %v288, %v375
  %v417 = vadd.f32 %v289, %v377
  %v418 = vadd.f32 %v290, %v379
  %v419 = vadd.f32 %v291, %v381
  %v420 = vadd.f32 %v292, %v383
  %v421 = vadd.f32 %v293, %v385
  %v422 = vadd.f32 %v294, %v387
  %v423 = vadd.f32 %v295, %v389
  %v424 = vadd.f32 %v296, %v391
  %v425 = vadd.f32 %v297, %v393
  %426 = vrot.lane.b32.xlu0 %v58, 80
  %v427 = vpop.permute.xlu0 %426
  %428 = vrot.lane.b32.xlu0 %v59, 80
  %v429 = vpop.permute.xlu0 %428
  %430 = vrot.lane.b32.xlu0 %v60, 80
  %v431 = vpop.permute.xlu0 %430
  %432 = vrot.lane.b32.xlu0 %v61, 80
  %v433 = vpop.permute.xlu0 %432
  %434 = vrot.lane.b32.xlu0 %v62, 80
  %v435 = vpop.permute.xlu0 %434
  %436 = vrot.lane.b32.xlu0 %v63, 80
  %v437 = vpop.permute.xlu0 %436
  %438 = vrot.lane.b32.xlu0 %v64, 80
  %v439 = vpop.permute.xlu0 %438
  %440 = vrot.lane.b32.xlu0 %v65, 80
  %v441 = vpop.permute.xlu0 %440
  %442 = vrot.lane.b32.xlu0 %v66, 80
  %v443 = vpop.permute.xlu0 %442
  %444 = vrot.lane.b32.xlu0 %v67, 80
  %v445 = vpop.permute.xlu0 %444
  %446 = vrot.lane.b32.xlu0 %v68, 80
  %v447 = vpop.permute.xlu0 %446
  %448 = vrot.lane.b32.xlu0 %v69, 80
  %v449 = vpop.permute.xlu0 %448
  %450 = vrot.lane.b32.xlu0 %v70, 80
  %v451 = vpop.permute.xlu0 %450
  %452 = vrot.lane.b32.xlu0 %v71, 80
  %v453 = vpop.permute.xlu0 %452
  %454 = vrot.lane.b32.xlu0 %v72, 80
  %v455 = vpop.permute.xlu0 %454
  %456 = vrot.lane.b32.xlu0 %v73, 80
  %v457 = vpop.permute.xlu0 %456
  %v474 = vadd.f32 %v346, %v427
  %v475 = vadd.f32 %v347, %v429
  %v476 = vadd.f32 %v348, %v431
  %v477 = vadd.f32 %v349, %v433
  %v478 = vadd.f32 %v350, %v435
  %v479 = vadd.f32 %v351, %v437
  %v480 = vadd.f32 %v352, %v439
  %v481 = vadd.f32 %v353, %v441
  %v482 = vadd.f32 %v354, %v443
  %v483 = vadd.f32 %v355, %v445
  %v484 = vadd.f32 %v356, %v447
  %v485 = vadd.f32 %v357, %v449
  %v486 = vadd.f32 %v358, %v451
  %v487 = vadd.f32 %v359, %v453
  %v488 = vadd.f32 %v360, %v455
  %v489 = vadd.f32 %v361, %v457
  %490 = vrot.lane.b32.xlu0 %v42, 64
  %v491 = vpop.permute.xlu0 %490
  %492 = vrot.lane.b32.xlu0 %v43, 64
  %v493 = vpop.permute.xlu0 %492
  %494 = vrot.lane.b32.xlu0 %v44, 64
  %v495 = vpop.permute.xlu0 %494
  %496 = vrot.lane.b32.xlu0 %v45, 64
  %v497 = vpop.permute.xlu0 %496
  %498 = vrot.lane.b32.xlu0 %v46, 64
  %v499 = vpop.permute.xlu0 %498
  %500 = vrot.lane.b32.xlu0 %v47, 64
  %v501 = vpop.permute.xlu0 %500
  %502 = vrot.lane.b32.xlu0 %v48, 64
  %v503 = vpop.permute.xlu0 %502
  %504 = vrot.lane.b32.xlu0 %v49, 64
  %v505 = vpop.permute.xlu0 %504
  %506 = vrot.lane.b32.xlu0 %v50, 64
  %v507 = vpop.permute.xlu0 %506
  %508 = vrot.lane.b32.xlu0 %v51, 64
  %v509 = vpop.permute.xlu0 %508
  %510 = vrot.lane.b32.xlu0 %v52, 64
  %v511 = vpop.permute.xlu0 %510
  %512 = vrot.lane.b32.xlu0 %v53, 64
  %v513 = vpop.permute.xlu0 %512
  %514 = vrot.lane.b32.xlu0 %v54, 64
  %v515 = vpop.permute.xlu0 %514
  %516 = vrot.lane.b32.xlu0 %v55, 64
  %v517 = vpop.permute.xlu0 %516
  %518 = vrot.lane.b32.xlu0 %v56, 64
  %v519 = vpop.permute.xlu0 %518
  %520 = vrot.lane.b32.xlu0 %v57, 64
  %v521 = vpop.permute.xlu0 %520
  %v538 = vadd.f32 %v410, %v491
  %v539 = vadd.f32 %v411, %v493
  %v540 = vadd.f32 %v412, %v495
  %v541 = vadd.f32 %v413, %v497
  %v542 = vadd.f32 %v414, %v499
  %v543 = vadd.f32 %v415, %v501
  %v544 = vadd.f32 %v416, %v503
  %v545 = vadd.f32 %v417, %v505
  %v546 = vadd.f32 %v418, %v507
  %v547 = vadd.f32 %v419, %v509
  %v548 = vadd.f32 %v420, %v511
  %v549 = vadd.f32 %v421, %v513
  %v550 = vadd.f32 %v422, %v515
  %v551 = vadd.f32 %v423, %v517
  %v552 = vadd.f32 %v424, %v519
  %v553 = vadd.f32 %v425, %v521
  %554 = vrot.lane.b32.xlu0 %v58, 64
  %v555 = vpop.permute.xlu0 %554
  %556 = vrot.lane.b32.xlu0 %v59, 64
  %v557 = vpop.permute.xlu0 %556
  %558 = vrot.lane.b32.xlu0 %v60, 64
  %v559 = vpop.permute.xlu0 %558
  %560 = vrot.lane.b32.xlu0 %v61, 64
  %v561 = vpop.permute.xlu0 %560
  %562 = vrot.lane.b32.xlu0 %v62, 64
  %v563 = vpop.permute.xlu0 %562
  %564 = vrot.lane.b32.xlu0 %v63, 64
  %v565 = vpop.permute.xlu0 %564
  %566 = vrot.lane.b32.xlu0 %v64, 64
  %v567 = vpop.permute.xlu0 %566
  %568 = vrot.lane.b32.xlu0 %v65, 64
  %v569 = vpop.permute.xlu0 %568
  %570 = vrot.lane.b32.xlu0 %v66, 64
  %v571 = vpop.permute.xlu0 %570
  %572 = vrot.lane.b32.xlu0 %v67, 64
  %v573 = vpop.permute.xlu0 %572
  %574 = vrot.lane.b32.xlu0 %v68, 64
  %v575 = vpop.permute.xlu0 %574
  %576 = vrot.lane.b32.xlu0 %v69, 64
  %v577 = vpop.permute.xlu0 %576
  %578 = vrot.lane.b32.xlu0 %v70, 64
  %v579 = vpop.permute.xlu0 %578
  %580 = vrot.lane.b32.xlu0 %v71, 64
  %v581 = vpop.permute.xlu0 %580
  %582 = vrot.lane.b32.xlu0 %v72, 64
  %v583 = vpop.permute.xlu0 %582
  %584 = vrot.lane.b32.xlu0 %v73, 64
  %v585 = vpop.permute.xlu0 %584
  %v602 = vadd.f32 %v474, %v555
  %v603 = vadd.f32 %v475, %v557
  %v604 = vadd.f32 %v476, %v559
  %v605 = vadd.f32 %v477, %v561
  %v606 = vadd.f32 %v478, %v563
  %v607 = vadd.f32 %v479, %v565
  %v608 = vadd.f32 %v480, %v567
  %v609 = vadd.f32 %v481, %v569
  %v610 = vadd.f32 %v482, %v571
  %v611 = vadd.f32 %v483, %v573
  %v612 = vadd.f32 %v484, %v575
  %v613 = vadd.f32 %v485, %v577
  %v614 = vadd.f32 %v486, %v579
  %v615 = vadd.f32 %v487, %v581
  %v616 = vadd.f32 %v488, %v583
  %v617 = vadd.f32 %v489, %v585
  %618 = vrot.lane.b32.xlu0 %v42, 48
  %v619 = vpop.permute.xlu0 %618
  %620 = vrot.lane.b32.xlu0 %v43, 48
  %v621 = vpop.permute.xlu0 %620
  %622 = vrot.lane.b32.xlu0 %v44, 48
  %v623 = vpop.permute.xlu0 %622
  %624 = vrot.lane.b32.xlu0 %v45, 48
  %v625 = vpop.permute.xlu0 %624
  %626 = vrot.lane.b32.xlu0 %v46, 48
  %v627 = vpop.permute.xlu0 %626
  %628 = vrot.lane.b32.xlu0 %v47, 48
  %v629 = vpop.permute.xlu0 %628
  %630 = vrot.lane.b32.xlu0 %v48, 48
  %v631 = vpop.permute.xlu0 %630
  %632 = vrot.lane.b32.xlu0 %v49, 48
  %v633 = vpop.permute.xlu0 %632
  %634 = vrot.lane.b32.xlu0 %v50, 48
  %v635 = vpop.permute.xlu0 %634
  %636 = vrot.lane.b32.xlu0 %v51, 48
  %v637 = vpop.permute.xlu0 %636
  %638 = vrot.lane.b32.xlu0 %v52, 48
  %v639 = vpop.permute.xlu0 %638
  %640 = vrot.lane.b32.xlu0 %v53, 48
  %v641 = vpop.permute.xlu0 %640
  %642 = vrot.lane.b32.xlu0 %v54, 48
  %v643 = vpop.permute.xlu0 %642
  %644 = vrot.lane.b32.xlu0 %v55, 48
  %v645 = vpop.permute.xlu0 %644
  %646 = vrot.lane.b32.xlu0 %v56, 48
  %v647 = vpop.permute.xlu0 %646
  %648 = vrot.lane.b32.xlu0 %v57, 48
  %v649 = vpop.permute.xlu0 %648
  %v666 = vadd.f32 %v538, %v619
  %v667 = vadd.f32 %v539, %v621
  %v668 = vadd.f32 %v540, %v623
  %v669 = vadd.f32 %v541, %v625
  %v670 = vadd.f32 %v542, %v627
  %v671 = vadd.f32 %v543, %v629
  %v672 = vadd.f32 %v544, %v631
  %v673 = vadd.f32 %v545, %v633
  %v674 = vadd.f32 %v546, %v635
  %v675 = vadd.f32 %v547, %v637
  %v676 = vadd.f32 %v548, %v639
  %v677 = vadd.f32 %v549, %v641
  %v678 = vadd.f32 %v550, %v643
  %v679 = vadd.f32 %v551, %v645
  %v680 = vadd.f32 %v552, %v647
  %v681 = vadd.f32 %v553, %v649
  %682 = vrot.lane.b32.xlu0 %v58, 48
  %v683 = vpop.permute.xlu0 %682
  %684 = vrot.lane.b32.xlu0 %v59, 48
  %v685 = vpop.permute.xlu0 %684
  %686 = vrot.lane.b32.xlu0 %v60, 48
  %v687 = vpop.permute.xlu0 %686
  %688 = vrot.lane.b32.xlu0 %v61, 48
  %v689 = vpop.permute.xlu0 %688
  %690 = vrot.lane.b32.xlu0 %v62, 48
  %v691 = vpop.permute.xlu0 %690
  %692 = vrot.lane.b32.xlu0 %v63, 48
  %v693 = vpop.permute.xlu0 %692
  %694 = vrot.lane.b32.xlu0 %v64, 48
  %v695 = vpop.permute.xlu0 %694
  %696 = vrot.lane.b32.xlu0 %v65, 48
  %v697 = vpop.permute.xlu0 %696
  %698 = vrot.lane.b32.xlu0 %v66, 48
  %v699 = vpop.permute.xlu0 %698
  %700 = vrot.lane.b32.xlu0 %v67, 48
  %v701 = vpop.permute.xlu0 %700
  %702 = vrot.lane.b32.xlu0 %v68, 48
  %v703 = vpop.permute.xlu0 %702
  %704 = vrot.lane.b32.xlu0 %v69, 48
  %v705 = vpop.permute.xlu0 %704
  %706 = vrot.lane.b32.xlu0 %v70, 48
  %v707 = vpop.permute.xlu0 %706
  %708 = vrot.lane.b32.xlu0 %v71, 48
  %v709 = vpop.permute.xlu0 %708
  %710 = vrot.lane.b32.xlu0 %v72, 48
  %v711 = vpop.permute.xlu0 %710
  %712 = vrot.lane.b32.xlu0 %v73, 48
  %v713 = vpop.permute.xlu0 %712
  %v730 = vadd.f32 %v602, %v683
  %v731 = vadd.f32 %v603, %v685
  %v732 = vadd.f32 %v604, %v687
  %v733 = vadd.f32 %v605, %v689
  %v734 = vadd.f32 %v606, %v691
  %v735 = vadd.f32 %v607, %v693
  %v736 = vadd.f32 %v608, %v695
  %v737 = vadd.f32 %v609, %v697
  %v738 = vadd.f32 %v610, %v699
  %v739 = vadd.f32 %v611, %v701
  %v740 = vadd.f32 %v612, %v703
  %v741 = vadd.f32 %v613, %v705
  %v742 = vadd.f32 %v614, %v707
  %v743 = vadd.f32 %v615, %v709
  %v744 = vadd.f32 %v616, %v711
  %v745 = vadd.f32 %v617, %v713
  %746 = vrot.lane.b32.xlu0 %v42, 32
  %v747 = vpop.permute.xlu0 %746
  %748 = vrot.lane.b32.xlu0 %v43, 32
  %v749 = vpop.permute.xlu0 %748
  %750 = vrot.lane.b32.xlu0 %v44, 32
  %v751 = vpop.permute.xlu0 %750
  %752 = vrot.lane.b32.xlu0 %v45, 32
  %v753 = vpop.permute.xlu0 %752
  %754 = vrot.lane.b32.xlu0 %v46, 32
  %v755 = vpop.permute.xlu0 %754
  %756 = vrot.lane.b32.xlu0 %v47, 32
  %v757 = vpop.permute.xlu0 %756
  %758 = vrot.lane.b32.xlu0 %v48, 32
  %v759 = vpop.permute.xlu0 %758
  %760 = vrot.lane.b32.xlu0 %v49, 32
  %v761 = vpop.permute.xlu0 %760
  %762 = vrot.lane.b32.xlu0 %v50, 32
  %v763 = vpop.permute.xlu0 %762
  %764 = vrot.lane.b32.xlu0 %v51, 32
  %v765 = vpop.permute.xlu0 %764
  %766 = vrot.lane.b32.xlu0 %v52, 32
  %v767 = vpop.permute.xlu0 %766
  %768 = vrot.lane.b32.xlu0 %v53, 32
  %v769 = vpop.permute.xlu0 %768
  %770 = vrot.lane.b32.xlu0 %v54, 32
  %v771 = vpop.permute.xlu0 %770
  %772 = vrot.lane.b32.xlu0 %v55, 32
  %v773 = vpop.permute.xlu0 %772
  %774 = vrot.lane.b32.xlu0 %v56, 32
  %v775 = vpop.permute.xlu0 %774
  %776 = vrot.lane.b32.xlu0 %v57, 32
  %v777 = vpop.permute.xlu0 %776
  %v794 = vadd.f32 %v666, %v747
  %v795 = vadd.f32 %v667, %v749
  %v796 = vadd.f32 %v668, %v751
  %v797 = vadd.f32 %v669, %v753
  %v798 = vadd.f32 %v670, %v755
  %v799 = vadd.f32 %v671, %v757
  %v800 = vadd.f32 %v672, %v759
  %v801 = vadd.f32 %v673, %v761
  %v802 = vadd.f32 %v674, %v763
  %v803 = vadd.f32 %v675, %v765
  %v804 = vadd.f32 %v676, %v767
  %v805 = vadd.f32 %v677, %v769
  %v806 = vadd.f32 %v678, %v771
  %v807 = vadd.f32 %v679, %v773
  %v808 = vadd.f32 %v680, %v775
  %v809 = vadd.f32 %v681, %v777
  %810 = vrot.lane.b32.xlu0 %v58, 32
  %v811 = vpop.permute.xlu0 %810
  %812 = vrot.lane.b32.xlu0 %v59, 32
  %v813 = vpop.permute.xlu0 %812
  %814 = vrot.lane.b32.xlu0 %v60, 32
  %v815 = vpop.permute.xlu0 %814
  %816 = vrot.lane.b32.xlu0 %v61, 32
  %v817 = vpop.permute.xlu0 %816
  %818 = vrot.lane.b32.xlu0 %v62, 32
  %v819 = vpop.permute.xlu0 %818
  %820 = vrot.lane.b32.xlu0 %v63, 32
  %v821 = vpop.permute.xlu0 %820
  %822 = vrot.lane.b32.xlu0 %v64, 32
  %v823 = vpop.permute.xlu0 %822
  %824 = vrot.lane.b32.xlu0 %v65, 32
  %v825 = vpop.permute.xlu0 %824
  %826 = vrot.lane.b32.xlu0 %v66, 32
  %v827 = vpop.permute.xlu0 %826
  %828 = vrot.lane.b32.xlu0 %v67, 32
  %v829 = vpop.permute.xlu0 %828
  %830 = vrot.lane.b32.xlu0 %v68, 32
  %v831 = vpop.permute.xlu0 %830
  %832 = vrot.lane.b32.xlu0 %v69, 32
  %v833 = vpop.permute.xlu0 %832
  %834 = vrot.lane.b32.xlu0 %v70, 32
  %v835 = vpop.permute.xlu0 %834
  %836 = vrot.lane.b32.xlu0 %v71, 32
  %v837 = vpop.permute.xlu0 %836
  %838 = vrot.lane.b32.xlu0 %v72, 32
  %v839 = vpop.permute.xlu0 %838
  %840 = vrot.lane.b32.xlu0 %v73, 32
  %v841 = vpop.permute.xlu0 %840
  %v858 = vadd.f32 %v730, %v811
  %v859 = vadd.f32 %v731, %v813
  %v860 = vadd.f32 %v732, %v815
  %v861 = vadd.f32 %v733, %v817
  %v862 = vadd.f32 %v734, %v819
  %v863 = vadd.f32 %v735, %v821
  %v864 = vadd.f32 %v736, %v823
  %v865 = vadd.f32 %v737, %v825
  %v866 = vadd.f32 %v738, %v827
  %v867 = vadd.f32 %v739, %v829
  %v868 = vadd.f32 %v740, %v831
  %v869 = vadd.f32 %v741, %v833
  %v870 = vadd.f32 %v742, %v835
  %v871 = vadd.f32 %v743, %v837
  %v872 = vadd.f32 %v744, %v839
  %v873 = vadd.f32 %v745, %v841
  %874 = vrot.lane.b32.xlu0 %v42, 16
  %v875 = vpop.permute.xlu0 %874
  %876 = vrot.lane.b32.xlu0 %v43, 16
  %v877 = vpop.permute.xlu0 %876
  %878 = vrot.lane.b32.xlu0 %v44, 16
  %v879 = vpop.permute.xlu0 %878
  %880 = vrot.lane.b32.xlu0 %v45, 16
  %v881 = vpop.permute.xlu0 %880
  %882 = vrot.lane.b32.xlu0 %v46, 16
  %v883 = vpop.permute.xlu0 %882
  %884 = vrot.lane.b32.xlu0 %v47, 16
  %v885 = vpop.permute.xlu0 %884
  %886 = vrot.lane.b32.xlu0 %v48, 16
  %v887 = vpop.permute.xlu0 %886
  %888 = vrot.lane.b32.xlu0 %v49, 16
  %v889 = vpop.permute.xlu0 %888
  %890 = vrot.lane.b32.xlu0 %v50, 16
  %v891 = vpop.permute.xlu0 %890
  %892 = vrot.lane.b32.xlu0 %v51, 16
  %v893 = vpop.permute.xlu0 %892
  %894 = vrot.lane.b32.xlu0 %v52, 16
  %v895 = vpop.permute.xlu0 %894
  %896 = vrot.lane.b32.xlu0 %v53, 16
  %v897 = vpop.permute.xlu0 %896
  %898 = vrot.lane.b32.xlu0 %v54, 16
  %v899 = vpop.permute.xlu0 %898
  %900 = vrot.lane.b32.xlu0 %v55, 16
  %v901 = vpop.permute.xlu0 %900
  %902 = vrot.lane.b32.xlu0 %v56, 16
  %v903 = vpop.permute.xlu0 %902
  %904 = vrot.lane.b32.xlu0 %v57, 16
  %v905 = vpop.permute.xlu0 %904
  %v922 = vadd.f32 %v794, %v875
  %v923 = vadd.f32 %v795, %v877
  %v924 = vadd.f32 %v796, %v879
  %v925 = vadd.f32 %v797, %v881
  %v926 = vadd.f32 %v798, %v883
  %v927 = vadd.f32 %v799, %v885
  %v928 = vadd.f32 %v800, %v887
  %v929 = vadd.f32 %v801, %v889
  %v930 = vadd.f32 %v802, %v891
  %v931 = vadd.f32 %v803, %v893
  %v932 = vadd.f32 %v804, %v895
  %v933 = vadd.f32 %v805, %v897
  %v934 = vadd.f32 %v806, %v899
  %v935 = vadd.f32 %v807, %v901
  %v936 = vadd.f32 %v808, %v903
  %v937 = vadd.f32 %v809, %v905
  %938 = vrot.lane.b32.xlu0 %v58, 16
  %v939 = vpop.permute.xlu0 %938
  %940 = vrot.lane.b32.xlu0 %v59, 16
  %v941 = vpop.permute.xlu0 %940
  %942 = vrot.lane.b32.xlu0 %v60, 16
  %v943 = vpop.permute.xlu0 %942
  %944 = vrot.lane.b32.xlu0 %v61, 16
  %v945 = vpop.permute.xlu0 %944
  %946 = vrot.lane.b32.xlu0 %v62, 16
  %v947 = vpop.permute.xlu0 %946
  %948 = vrot.lane.b32.xlu0 %v63, 16
  %v949 = vpop.permute.xlu0 %948
  %950 = vrot.lane.b32.xlu0 %v64, 16
  %v951 = vpop.permute.xlu0 %950
  %952 = vrot.lane.b32.xlu0 %v65, 16
  %v953 = vpop.permute.xlu0 %952
  %954 = vrot.lane.b32.xlu0 %v66, 16
  %v955 = vpop.permute.xlu0 %954
  %956 = vrot.lane.b32.xlu0 %v67, 16
  %v957 = vpop.permute.xlu0 %956
  %958 = vrot.lane.b32.xlu0 %v68, 16
  %v959 = vpop.permute.xlu0 %958
  %960 = vrot.lane.b32.xlu0 %v69, 16
  %v961 = vpop.permute.xlu0 %960
  %962 = vrot.lane.b32.xlu0 %v70, 16
  %v963 = vpop.permute.xlu0 %962
  %964 = vrot.lane.b32.xlu0 %v71, 16
  %v965 = vpop.permute.xlu0 %964
  %966 = vrot.lane.b32.xlu0 %v72, 16
  %v967 = vpop.permute.xlu0 %966
  %968 = vrot.lane.b32.xlu0 %v73, 16
  %v969 = vpop.permute.xlu0 %968
  %v986 = vadd.f32 %v858, %v939
  %v987 = vadd.f32 %v859, %v941
  %v988 = vadd.f32 %v860, %v943
  %v989 = vadd.f32 %v861, %v945
  %v990 = vadd.f32 %v862, %v947
  %v991 = vadd.f32 %v863, %v949
  %v992 = vadd.f32 %v864, %v951
  %v993 = vadd.f32 %v865, %v953
  %v994 = vadd.f32 %v866, %v955
  %v995 = vadd.f32 %v867, %v957
  %v996 = vadd.f32 %v868, %v959
  %v997 = vadd.f32 %v869, %v961
  %v998 = vadd.f32 %v870, %v963
  %v999 = vadd.f32 %v871, %v965
  %v1000 = vadd.f32 %v872, %v967
  %v1001 = vadd.f32 %v873, %v969
  %v1002 = vmul.f32 %v922, %v922
  %v1003 = vmul.f32 %v923, %v923
  %v1004 = vmul.f32 %v924, %v924
  %v1005 = vmul.f32 %v925, %v925
  %v1006 = vmul.f32 %v926, %v926
  %v1007 = vmul.f32 %v927, %v927
  %v1008 = vmul.f32 %v928, %v928
  %v1009 = vmul.f32 %v929, %v929
  %v1010 = vmul.f32 %v930, %v930
  %v1011 = vmul.f32 %v931, %v931
  %v1012 = vmul.f32 %v932, %v932
  %v1013 = vmul.f32 %v933, %v933
  %v1014 = vmul.f32 %v934, %v934
  %v1015 = vmul.f32 %v935, %v935
  %v1016 = vmul.f32 %v936, %v936
  %v1017 = vmul.f32 %v937, %v937
  %v1018 = vsub.f32 %v1002, %v986
  %v1019 = vsub.f32 %v1003, %v987
  %v1020 = vsub.f32 %v1004, %v988
  %v1021 = vsub.f32 %v1005, %v989
  %v1022 = vsub.f32 %v1006, %v990
  %v1023 = vsub.f32 %v1007, %v991
  %v1024 = vsub.f32 %v1008, %v992
  %v1025 = vsub.f32 %v1009, %v993
  %v1026 = vsub.f32 %v1010, %v994
  %v1027 = vsub.f32 %v1011, %v995
  %v1028 = vsub.f32 %v1012, %v996
  %v1029 = vsub.f32 %v1013, %v997
  %v1030 = vsub.f32 %v1014, %v998
  %v1031 = vsub.f32 %v1015, %v999
  %v1032 = vsub.f32 %v1016, %v1000
  %v1033 = vsub.f32 %v1017, %v1001
  %v1034 = vmul.f32 %v1018, 0.5
  %v1035 = vmul.f32 %v1019, 0.5
  %v1036 = vmul.f32 %v1020, 0.5
  %v1037 = vmul.f32 %v1021, 0.5
  %v1038 = vmul.f32 %v1022, 0.5
  %v1039 = vmul.f32 %v1023, 0.5
  %v1040 = vmul.f32 %v1024, 0.5
  %v1041 = vmul.f32 %v1025, 0.5
  %v1042 = vmul.f32 %v1026, 0.5
  %v1043 = vmul.f32 %v1027, 0.5
  %v1044 = vmul.f32 %v1028, 0.5
  %v1045 = vmul.f32 %v1029, 0.5
  %v1046 = vmul.f32 %v1030, 0.5
  %v1047 = vmul.f32 %v1031, 0.5
  %v1048 = vmul.f32 %v1032, 0.5
  %v1049 = vmul.f32 %v1033, 0.5
  %v1050 = vld [vmem:[%s2] sm:$0xff]
  %v1051 = vld [vmem:[%s2 + $0x8] sm:$0xff]
  %v1052 = vld [vmem:[%s3] sm:$0x1]
  %v1054 = vperm.slane %v1052, 0
  %vm1056 = vcmask 130048
  %v1058 = vsel %vm1056, %v1034, 0
  %v1061 = vsel %vm1056, %v1035, 0
  %v1064 = vsel %vm1056, %v1036, 0
  %v1067 = vsel %vm1056, %v1037, 0
  %v1070 = vsel %vm1056, %v1038, 0
  %v1073 = vsel %vm1056, %v1039, 0
  %v1076 = vsel %vm1056, %v1040, 0
  %v1079 = vsel %vm1056, %v1041, 0
  %v1082 = vsel %vm1056, %v1042, 0
  %v1085 = vsel %vm1056, %v1043, 0
  %v1088 = vsel %vm1056, %v1044, 0
  %v1091 = vsel %vm1056, %v1045, 0
  %v1094 = vsel %vm1056, %v1046, 0
  %v1097 = vsel %vm1056, %v1047, 0
  %v1100 = vsel %vm1056, %v1048, 0
  %v1103 = vsel %vm1056, %v1049, 0
  %1105 = vmatpush.msra.mxu0 0.0
  %1106 = vmatpush.msra.mxu0 0.0
  %1107 = vmatpush.msra.mxu0 0.0
  %1108 = vmatpush.msra.mxu0 0.0
  %1109 = vmatpush.msra.mxu0 0.0
  %1110 = vmatpush.msra.mxu0 0.0
  %1111 = vmatpush.msra.mxu0 0.0
  %1112 = vmatpush.msra.mxu0 0.0
  %1113 = vmatpush.msra.mxu0 0.0
  %1114 = vmatpush.msra.mxu0 0.0
  %1115 = vmatpush.msra.mxu0 0.0
  %1116 = vmatpush.msra.mxu0 0.0
  %1117 = vmatpush.msra.mxu0 0.0
  %1118 = vmatpush.msra.mxu0 0.0
  %1119 = vmatpush.msra.mxu0 %v1051
  %1120 = vmatpush.msra.mxu0 %v1050
  %1121 = vmatmul.f32.gmra.mxu0 %v1058
  %v1122 = vpop.f32.mrf.mxu0
  %v1123 = vadd.f32 %v1054, %v1122
  %1124 = vmatmul.f32.gmra.mxu0 %v1061
  %v1125 = vpop.f32.mrf.mxu0
  %v1126 = vadd.f32 %v1054, %v1125
  %1127 = vmatmul.f32.gmra.mxu0 %v1064
  %v1128 = vpop.f32.mrf.mxu0
  %v1129 = vadd.f32 %v1054, %v1128
  %1130 = vmatmul.f32.gmra.mxu0 %v1067
  %v1131 = vpop.f32.mrf.mxu0
  %v1132 = vadd.f32 %v1054, %v1131
  %1133 = vmatmul.f32.gmra.mxu0 %v1070
  %v1134 = vpop.f32.mrf.mxu0
  %v1135 = vadd.f32 %v1054, %v1134
  %1136 = vmatmul.f32.gmra.mxu0 %v1073
  %v1137 = vpop.f32.mrf.mxu0
  %v1138 = vadd.f32 %v1054, %v1137
  %1139 = vmatmul.f32.gmra.mxu0 %v1076
  %v1140 = vpop.f32.mrf.mxu0
  %v1141 = vadd.f32 %v1054, %v1140
  %1142 = vmatmul.f32.gmra.mxu0 %v1079
  %v1143 = vpop.f32.mrf.mxu0
  %v1144 = vadd.f32 %v1054, %v1143
  %1145 = vmatmul.f32.gmra.mxu0 %v1082
  %v1146 = vpop.f32.mrf.mxu0
  %v1147 = vadd.f32 %v1054, %v1146
  %1148 = vmatmul.f32.gmra.mxu0 %v1085
  %v1149 = vpop.f32.mrf.mxu0
  %v1150 = vadd.f32 %v1054, %v1149
  %1151 = vmatmul.f32.gmra.mxu0 %v1088
  %v1152 = vpop.f32.mrf.mxu0
  %v1153 = vadd.f32 %v1054, %v1152
  %1154 = vmatmul.f32.gmra.mxu0 %v1091
  %v1155 = vpop.f32.mrf.mxu0
  %v1156 = vadd.f32 %v1054, %v1155
  %1157 = vmatmul.f32.gmra.mxu0 %v1094
  %v1158 = vpop.f32.mrf.mxu0
  %v1159 = vadd.f32 %v1054, %v1158
  %1160 = vmatmul.f32.gmra.mxu0 %v1097
  %v1161 = vpop.f32.mrf.mxu0
  %v1162 = vadd.f32 %v1054, %v1161
  %1163 = vmatmul.f32.gmra.mxu0 %v1100
  %v1164 = vpop.f32.mrf.mxu0
  %v1165 = vadd.f32 %v1054, %v1164
  %1166 = vmatmul.f32.gmra.mxu0 %v1103
  %v1167 = vpop.f32.mrf.mxu0
  %v1168 = vadd.f32 %v1054, %v1167
  %1169 = vdwg.mxu0
  %v1170 = vmax.f32 %v1123, 0.0
  %v1171 = vmax.f32 %v1126, 0.0
  %v1172 = vmax.f32 %v1129, 0.0
  %v1173 = vmax.f32 %v1132, 0.0
  %v1174 = vmax.f32 %v1135, 0.0
  %v1175 = vmax.f32 %v1138, 0.0
  %v1176 = vmax.f32 %v1141, 0.0
  %v1177 = vmax.f32 %v1144, 0.0
  %v1178 = vmax.f32 %v1147, 0.0
  %v1179 = vmax.f32 %v1150, 0.0
  %v1180 = vmax.f32 %v1153, 0.0
  %v1181 = vmax.f32 %v1156, 0.0
  %v1182 = vmax.f32 %v1159, 0.0
  %v1183 = vmax.f32 %v1162, 0.0
  %v1184 = vmax.f32 %v1165, 0.0
  %v1185 = vmax.f32 %v1168, 0.0
  %v1186 = vld [vmem:[%s4] sm:$0xff]
  %v1187 = vld [vmem:[%s4 + $0x8] sm:$0xff]
  %v1188 = vld [vmem:[%s4 + $0x10] sm:$0xff]
  %v1189 = vld [vmem:[%s4 + $0x18] sm:$0xff]
  %v1190 = vld [vmem:[%s5] sm:$0x1]
  %v1192 = vperm.slane %v1190, 0
  %vm1194 = vcmask 261120
  %v1196 = vsel %vm1194, %v1170, 0
  %v1199 = vsel %vm1194, %v1171, 0
  %v1202 = vsel %vm1194, %v1172, 0
  %v1205 = vsel %vm1194, %v1173, 0
  %v1208 = vsel %vm1194, %v1174, 0
  %v1211 = vsel %vm1194, %v1175, 0
  %v1214 = vsel %vm1194, %v1176, 0
  %v1217 = vsel %vm1194, %v1177, 0
  %v1220 = vsel %vm1194, %v1178, 0
  %v1223 = vsel %vm1194, %v1179, 0
  %v1226 = vsel %vm1194, %v1180, 0
  %v1229 = vsel %vm1194, %v1181, 0
  %v1232 = vsel %vm1194, %v1182, 0
  %v1235 = vsel %vm1194, %v1183, 0
  %v1238 = vsel %vm1194, %v1184, 0
  %v1241 = vsel %vm1194, %v1185, 0
  %1243 = vmatpush.msra.mxu0 0.0
  %1244 = vmatpush.msra.mxu0 0.0
  %1245 = vmatpush.msra.mxu0 0.0
  %1246 = vmatpush.msra.mxu0 0.0
  %1247 = vmatpush.msra.mxu0 0.0
  %1248 = vmatpush.msra.mxu0 0.0
  %1249 = vmatpush.msra.mxu0 0.0
  %1250 = vmatpush.msra.mxu0 0.0
  %1251 = vmatpush.msra.mxu0 0.0
  %1252 = vmatpush.msra.mxu0 0.0
  %1253 = vmatpush.msra.mxu0 0.0
  %1254 = vmatpush.msra.mxu0 0.0
  %1255 = vmatpush.msra.mxu0 %v1189
  %1256 = vmatpush.msra.mxu0 %v1188
  %1257 = vmatpush.msra.mxu0 %v1187
  %1258 = vmatpush.msra.mxu0 %v1186
  %1259 = vmatmul.f32.gmra.mxu0 %v1196
  %v1260 = vpop.f32.mrf.mxu0
  %v1261 = vadd.f32 %v1192, %v1260
  %1262 = vmatmul.f32.gmra.mxu0 %v1199
  %v1263 = vpop.f32.mrf.mxu0
  %v1264 = vadd.f32 %v1192, %v1263
  %1265 = vmatmul.f32.gmra.mxu0 %v1202
  %v1266 = vpop.f32.mrf.mxu0
  %v1267 = vadd.f32 %v1192, %v1266
  %1268 = vmatmul.f32.gmra.mxu0 %v1205
  %v1269 = vpop.f32.mrf.mxu0
  %v1270 = vadd.f32 %v1192, %v1269
  %1271 = vmatmul.f32.gmra.mxu0 %v1208
  %v1272 = vpop.f32.mrf.mxu0
  %v1273 = vadd.f32 %v1192, %v1272
  %1274 = vmatmul.f32.gmra.mxu0 %v1211
  %v1275 = vpop.f32.mrf.mxu0
  %v1276 = vadd.f32 %v1192, %v1275
  %1277 = vmatmul.f32.gmra.mxu0 %v1214
  %v1278 = vpop.f32.mrf.mxu0
  %v1279 = vadd.f32 %v1192, %v1278
  %1280 = vmatmul.f32.gmra.mxu0 %v1217
  %v1281 = vpop.f32.mrf.mxu0
  %v1282 = vadd.f32 %v1192, %v1281
  %1283 = vmatmul.f32.gmra.mxu0 %v1220
  %v1284 = vpop.f32.mrf.mxu0
  %v1285 = vadd.f32 %v1192, %v1284
  %1286 = vmatmul.f32.gmra.mxu0 %v1223
  %v1287 = vpop.f32.mrf.mxu0
  %v1288 = vadd.f32 %v1192, %v1287
  %1289 = vmatmul.f32.gmra.mxu0 %v1226
  %v1290 = vpop.f32.mrf.mxu0
  %v1291 = vadd.f32 %v1192, %v1290
  %1292 = vmatmul.f32.gmra.mxu0 %v1229
  %v1293 = vpop.f32.mrf.mxu0
  %v1294 = vadd.f32 %v1192, %v1293
  %1295 = vmatmul.f32.gmra.mxu0 %v1232
  %v1296 = vpop.f32.mrf.mxu0
  %v1297 = vadd.f32 %v1192, %v1296
  %1298 = vmatmul.f32.gmra.mxu0 %v1235
  %v1299 = vpop.f32.mrf.mxu0
  %v1300 = vadd.f32 %v1192, %v1299
  %1301 = vmatmul.f32.gmra.mxu0 %v1238
  %v1302 = vpop.f32.mrf.mxu0
  %v1303 = vadd.f32 %v1192, %v1302
  %1304 = vmatmul.f32.gmra.mxu0 %v1241
  %v1305 = vpop.f32.mrf.mxu0
  %v1306 = vadd.f32 %v1192, %v1305
  %1307 = vdwg.mxu0
  %v1308 = vmax.f32 %v1261, 0.0
  %v1309 = vmax.f32 %v1264, 0.0
  %v1310 = vmax.f32 %v1267, 0.0
  %v1311 = vmax.f32 %v1270, 0.0
  %v1312 = vmax.f32 %v1273, 0.0
  %v1313 = vmax.f32 %v1276, 0.0
  %v1314 = vmax.f32 %v1279, 0.0
  %v1315 = vmax.f32 %v1282, 0.0
  %v1316 = vmax.f32 %v1285, 0.0
  %v1317 = vmax.f32 %v1288, 0.0
  %v1318 = vmax.f32 %v1291, 0.0
  %v1319 = vmax.f32 %v1294, 0.0
  %v1320 = vmax.f32 %v1297, 0.0
  %v1321 = vmax.f32 %v1300, 0.0
  %v1322 = vmax.f32 %v1303, 0.0
  %v1323 = vmax.f32 %v1306, 0.0
  %v1324 = vld [vmem:[%s6] sm:$0x1]
  %v1326 = vperm.slane %v1324, 0
  %v1328 = vmul.f32 %v1308, %v1326
  %v1329 = vmul.f32 %v1309, %v1326
  %v1330 = vmul.f32 %v1310, %v1326
  %v1331 = vmul.f32 %v1311, %v1326
  %v1332 = vmul.f32 %v1312, %v1326
  %v1333 = vmul.f32 %v1313, %v1326
  %v1334 = vmul.f32 %v1314, %v1326
  %v1335 = vmul.f32 %v1315, %v1326
  %v1336 = vmul.f32 %v1316, %v1326
  %v1337 = vmul.f32 %v1317, %v1326
  %v1338 = vmul.f32 %v1318, %v1326
  %v1339 = vmul.f32 %v1319, %v1326
  %v1340 = vmul.f32 %v1320, %v1326
  %v1341 = vmul.f32 %v1321, %v1326
  %v1342 = vmul.f32 %v1322, %v1326
  %v1343 = vmul.f32 %v1323, %v1326
  %v1344 = vsel %vm1194, %v1328, 0.0
  %1345 = vadd.xlane.f32.xlu0 %v1344
  %v1346 = vpop.xlane.xlu0 %1345
  %v1347 = vsel %vm1194, %v1329, 0.0
  %1348 = vadd.xlane.f32.xlu0 %v1347
  %v1349 = vpop.xlane.xlu0 %1348
  %v1350 = vsel %vm1194, %v1330, 0.0
  %1351 = vadd.xlane.f32.xlu0 %v1350
  %v1352 = vpop.xlane.xlu0 %1351
  %v1353 = vsel %vm1194, %v1331, 0.0
  %1354 = vadd.xlane.f32.xlu0 %v1353
  %v1355 = vpop.xlane.xlu0 %1354
  %v1356 = vsel %vm1194, %v1332, 0.0
  %1357 = vadd.xlane.f32.xlu0 %v1356
  %v1358 = vpop.xlane.xlu0 %1357
  %v1359 = vsel %vm1194, %v1333, 0.0
  %1360 = vadd.xlane.f32.xlu0 %v1359
  %v1361 = vpop.xlane.xlu0 %1360
  %v1362 = vsel %vm1194, %v1334, 0.0
  %1363 = vadd.xlane.f32.xlu0 %v1362
  %v1364 = vpop.xlane.xlu0 %1363
  %v1365 = vsel %vm1194, %v1335, 0.0
  %1366 = vadd.xlane.f32.xlu0 %v1365
  %v1367 = vpop.xlane.xlu0 %1366
  %v1368 = vsel %vm1194, %v1336, 0.0
  %1369 = vadd.xlane.f32.xlu0 %v1368
  %v1370 = vpop.xlane.xlu0 %1369
  %v1371 = vsel %vm1194, %v1337, 0.0
  %1372 = vadd.xlane.f32.xlu0 %v1371
  %v1373 = vpop.xlane.xlu0 %1372
  %v1374 = vsel %vm1194, %v1338, 0.0
  %1375 = vadd.xlane.f32.xlu0 %v1374
  %v1376 = vpop.xlane.xlu0 %1375
  %v1377 = vsel %vm1194, %v1339, 0.0
  %1378 = vadd.xlane.f32.xlu0 %v1377
  %v1379 = vpop.xlane.xlu0 %1378
  %v1380 = vsel %vm1194, %v1340, 0.0
  %1381 = vadd.xlane.f32.xlu0 %v1380
  %v1382 = vpop.xlane.xlu0 %1381
  %v1383 = vsel %vm1194, %v1341, 0.0
  %1384 = vadd.xlane.f32.xlu0 %v1383
  %v1385 = vpop.xlane.xlu0 %1384
  %v1386 = vsel %vm1194, %v1342, 0.0
  %1387 = vadd.xlane.f32.xlu0 %v1386
  %v1388 = vpop.xlane.xlu0 %1387
  %v1389 = vsel %vm1194, %v1343, 0.0
  %1390 = vadd.xlane.f32.xlu0 %v1389
  %v1391 = vpop.xlane.xlu0 %1390
  %v1392 = vld [vmem:[%s1] sm:$0xff]
  %v1393 = vld [vmem:[%s1 + $0x8] sm:$0xff]
  %v1394 = vld [vmem:[%s1 + $0x10] sm:$0xff]
  %v1395 = vld [vmem:[%s1 + $0x18] sm:$0xff]
  %v1396 = vld [vmem:[%s1 + $0x20] sm:$0xff]
  %v1397 = vld [vmem:[%s1 + $0x28] sm:$0xff]
  %v1398 = vld [vmem:[%s1 + $0x30] sm:$0xff]
  %v1399 = vld [vmem:[%s1 + $0x38] sm:$0xff]
  %v1400 = vld [vmem:[%s1 + $0x40] sm:$0xff]
  %v1401 = vld [vmem:[%s1 + $0x48] sm:$0xff]
  %v1402 = vld [vmem:[%s1 + $0x50] sm:$0xff]
  %v1403 = vld [vmem:[%s1 + $0x58] sm:$0xff]
  %v1404 = vld [vmem:[%s1 + $0x60] sm:$0xff]
  %v1405 = vld [vmem:[%s1 + $0x68] sm:$0xff]
  %v1406 = vld [vmem:[%s1 + $0x70] sm:$0xff]
  %v1407 = vld [vmem:[%s1 + $0x78] sm:$0xff]
  %v1408 = vadd.f32 %v1346, %v1392
  %v1409 = vadd.f32 %v1349, %v1393
  %v1410 = vadd.f32 %v1352, %v1394
  %v1411 = vadd.f32 %v1355, %v1395
  %v1412 = vadd.f32 %v1358, %v1396
  %v1413 = vadd.f32 %v1361, %v1397
  %v1414 = vadd.f32 %v1364, %v1398
  %v1415 = vadd.f32 %v1367, %v1399
  %v1416 = vadd.f32 %v1370, %v1400
  %v1417 = vadd.f32 %v1373, %v1401
  %v1418 = vadd.f32 %v1376, %v1402
  %v1419 = vadd.f32 %v1379, %v1403
  %v1420 = vadd.f32 %v1382, %v1404
  %v1421 = vadd.f32 %v1385, %v1405
  %v1422 = vadd.f32 %v1388, %v1406
  %v1423 = vadd.f32 %v1391, %v1407
  %v1424 = vxor.u32 %v1408, 2147483648
  %v1425 = vxor.u32 %v1409, 2147483648
  %v1426 = vxor.u32 %v1410, 2147483648
  %v1427 = vxor.u32 %v1411, 2147483648
  %v1428 = vxor.u32 %v1412, 2147483648
  %v1429 = vxor.u32 %v1413, 2147483648
  %v1430 = vxor.u32 %v1414, 2147483648
  %v1431 = vxor.u32 %v1415, 2147483648
  %v1432 = vxor.u32 %v1416, 2147483648
  %v1433 = vxor.u32 %v1417, 2147483648
  %v1434 = vxor.u32 %v1418, 2147483648
  %v1435 = vxor.u32 %v1419, 2147483648
  %v1436 = vxor.u32 %v1420, 2147483648
  %v1437 = vxor.u32 %v1421, 2147483648
  %v1438 = vxor.u32 %v1422, 2147483648
  %v1439 = vxor.u32 %v1423, 2147483648
  %v1440 = vmul.f32 %v1424, 1.442695
  %v1441 = vpow.pop %v1440
  %v1442 = vmul.f32 %v1425, 1.442695
  %v1443 = vpow.pop %v1442
  %v1444 = vmul.f32 %v1426, 1.442695
  %v1445 = vpow.pop %v1444
  %v1446 = vmul.f32 %v1427, 1.442695
  %v1447 = vpow.pop %v1446
  %v1448 = vmul.f32 %v1428, 1.442695
  %v1449 = vpow.pop %v1448
  %v1450 = vmul.f32 %v1429, 1.442695
  %v1451 = vpow.pop %v1450
  %v1452 = vmul.f32 %v1430, 1.442695
  %v1453 = vpow.pop %v1452
  %v1454 = vmul.f32 %v1431, 1.442695
  %v1455 = vpow.pop %v1454
  %v1456 = vmul.f32 %v1432, 1.442695
  %v1457 = vpow.pop %v1456
  %v1458 = vmul.f32 %v1433, 1.442695
  %v1459 = vpow.pop %v1458
  %v1460 = vmul.f32 %v1434, 1.442695
  %v1461 = vpow.pop %v1460
  %v1462 = vmul.f32 %v1435, 1.442695
  %v1463 = vpow.pop %v1462
  %v1464 = vmul.f32 %v1436, 1.442695
  %v1465 = vpow.pop %v1464
  %v1466 = vmul.f32 %v1437, 1.442695
  %v1467 = vpow.pop %v1466
  %v1468 = vmul.f32 %v1438, 1.442695
  %v1469 = vpow.pop %v1468
  %v1470 = vmul.f32 %v1439, 1.442695
  %v1471 = vpow.pop %v1470
  %v1472 = vadd.f32 %v1441, 1.0
  %v1473 = vadd.f32 %v1443, 1.0
  %v1474 = vadd.f32 %v1445, 1.0
  %v1475 = vadd.f32 %v1447, 1.0
  %v1476 = vadd.f32 %v1449, 1.0
  %v1477 = vadd.f32 %v1451, 1.0
  %v1478 = vadd.f32 %v1453, 1.0
  %v1479 = vadd.f32 %v1455, 1.0
  %v1480 = vadd.f32 %v1457, 1.0
  %v1481 = vadd.f32 %v1459, 1.0
  %v1482 = vadd.f32 %v1461, 1.0
  %v1483 = vadd.f32 %v1463, 1.0
  %v1484 = vadd.f32 %v1465, 1.0
  %v1485 = vadd.f32 %v1467, 1.0
  %v1486 = vadd.f32 %v1469, 1.0
  %v1487 = vadd.f32 %v1471, 1.0
  %v1488 = vrcp.pop %v1472
  %v1489 = vmul.f32 %v1472, %v1488
  %v1490 = vsub.f32 1.0, %v1489
  %v1491 = vmul.f32 %v1488, %v1490
  %v1492 = vadd.f32 %v1488, %v1491
  %vm1493 = vweird.f32 %v1472
  %vm1494 = vweird.f32 %v1488
  %vm1495 = vmor %vm1493, %vm1494
  %v1496 = vsel %vm1495, %v1488, %v1492
  %v1497 = vand.u32 2147483647, %v1472
  %vm1498 = vcmp.eq.f32.partialorder %v1497, 8.507059e+37
  %v1499 = vand.u32 %v1472, 2147483648
  %v1500 = vor.u32 1.1754944e-38, %v1499
  %v1501 = vsel %vm1498, %v1500, %v1496
  %v1502 = vmul.f32 1.0, %v1501
  %v1503 = vrcp.pop %v1473
  %v1504 = vmul.f32 %v1473, %v1503
  %v1505 = vsub.f32 1.0, %v1504
  %v1506 = vmul.f32 %v1503, %v1505
  %v1507 = vadd.f32 %v1503, %v1506
  %vm1508 = vweird.f32 %v1473
  %vm1509 = vweird.f32 %v1503
  %vm1510 = vmor %vm1508, %vm1509
  %v1511 = vsel %vm1510, %v1503, %v1507
  %v1512 = vand.u32 2147483647, %v1473
  %vm1513 = vcmp.eq.f32.partialorder %v1512, 8.507059e+37
  %v1514 = vand.u32 %v1473, 2147483648
  %v1515 = vor.u32 1.1754944e-38, %v1514
  %v1516 = vsel %vm1513, %v1515, %v1511
  %v1517 = vmul.f32 1.0, %v1516
  %v1518 = vrcp.pop %v1474
  %v1519 = vmul.f32 %v1474, %v1518
  %v1520 = vsub.f32 1.0, %v1519
  %v1521 = vmul.f32 %v1518, %v1520
  %v1522 = vadd.f32 %v1518, %v1521
  %vm1523 = vweird.f32 %v1474
  %vm1524 = vweird.f32 %v1518
  %vm1525 = vmor %vm1523, %vm1524
  %v1526 = vsel %vm1525, %v1518, %v1522
  %v1527 = vand.u32 2147483647, %v1474
  %vm1528 = vcmp.eq.f32.partialorder %v1527, 8.507059e+37
  %v1529 = vand.u32 %v1474, 2147483648
  %v1530 = vor.u32 1.1754944e-38, %v1529
  %v1531 = vsel %vm1528, %v1530, %v1526
  %v1532 = vmul.f32 1.0, %v1531
  %v1533 = vrcp.pop %v1475
  %v1534 = vmul.f32 %v1475, %v1533
  %v1535 = vsub.f32 1.0, %v1534
  %v1536 = vmul.f32 %v1533, %v1535
  %v1537 = vadd.f32 %v1533, %v1536
  %vm1538 = vweird.f32 %v1475
  %vm1539 = vweird.f32 %v1533
  %vm1540 = vmor %vm1538, %vm1539
  %v1541 = vsel %vm1540, %v1533, %v1537
  %v1542 = vand.u32 2147483647, %v1475
  %vm1543 = vcmp.eq.f32.partialorder %v1542, 8.507059e+37
  %v1544 = vand.u32 %v1475, 2147483648
  %v1545 = vor.u32 1.1754944e-38, %v1544
  %v1546 = vsel %vm1543, %v1545, %v1541
  %v1547 = vmul.f32 1.0, %v1546
  %v1548 = vrcp.pop %v1476
  %v1549 = vmul.f32 %v1476, %v1548
  %v1550 = vsub.f32 1.0, %v1549
  %v1551 = vmul.f32 %v1548, %v1550
  %v1552 = vadd.f32 %v1548, %v1551
  %vm1553 = vweird.f32 %v1476
  %vm1554 = vweird.f32 %v1548
  %vm1555 = vmor %vm1553, %vm1554
  %v1556 = vsel %vm1555, %v1548, %v1552
  %v1557 = vand.u32 2147483647, %v1476
  %vm1558 = vcmp.eq.f32.partialorder %v1557, 8.507059e+37
  %v1559 = vand.u32 %v1476, 2147483648
  %v1560 = vor.u32 1.1754944e-38, %v1559
  %v1561 = vsel %vm1558, %v1560, %v1556
  %v1562 = vmul.f32 1.0, %v1561
  %v1563 = vrcp.pop %v1477
  %v1564 = vmul.f32 %v1477, %v1563
  %v1565 = vsub.f32 1.0, %v1564
  %v1566 = vmul.f32 %v1563, %v1565
  %v1567 = vadd.f32 %v1563, %v1566
  %vm1568 = vweird.f32 %v1477
  %vm1569 = vweird.f32 %v1563
  %vm1570 = vmor %vm1568, %vm1569
  %v1571 = vsel %vm1570, %v1563, %v1567
  %v1572 = vand.u32 2147483647, %v1477
  %vm1573 = vcmp.eq.f32.partialorder %v1572, 8.507059e+37
  %v1574 = vand.u32 %v1477, 2147483648
  %v1575 = vor.u32 1.1754944e-38, %v1574
  %v1576 = vsel %vm1573, %v1575, %v1571
  %v1577 = vmul.f32 1.0, %v1576
  %v1578 = vrcp.pop %v1478
  %v1579 = vmul.f32 %v1478, %v1578
  %v1580 = vsub.f32 1.0, %v1579
  %v1581 = vmul.f32 %v1578, %v1580
  %v1582 = vadd.f32 %v1578, %v1581
  %vm1583 = vweird.f32 %v1478
  %vm1584 = vweird.f32 %v1578
  %vm1585 = vmor %vm1583, %vm1584
  %v1586 = vsel %vm1585, %v1578, %v1582
  %v1587 = vand.u32 2147483647, %v1478
  %vm1588 = vcmp.eq.f32.partialorder %v1587, 8.507059e+37
  %v1589 = vand.u32 %v1478, 2147483648
  %v1590 = vor.u32 1.1754944e-38, %v1589
  %v1591 = vsel %vm1588, %v1590, %v1586
  %v1592 = vmul.f32 1.0, %v1591
  %v1593 = vrcp.pop %v1479
  %v1594 = vmul.f32 %v1479, %v1593
  %v1595 = vsub.f32 1.0, %v1594
  %v1596 = vmul.f32 %v1593, %v1595
  %v1597 = vadd.f32 %v1593, %v1596
  %vm1598 = vweird.f32 %v1479
  %vm1599 = vweird.f32 %v1593
  %vm1600 = vmor %vm1598, %vm1599
  %v1601 = vsel %vm1600, %v1593, %v1597
  %v1602 = vand.u32 2147483647, %v1479
  %vm1603 = vcmp.eq.f32.partialorder %v1602, 8.507059e+37
  %v1604 = vand.u32 %v1479, 2147483648
  %v1605 = vor.u32 1.1754944e-38, %v1604
  %v1606 = vsel %vm1603, %v1605, %v1601
  %v1607 = vmul.f32 1.0, %v1606
  %v1608 = vrcp.pop %v1480
  %v1609 = vmul.f32 %v1480, %v1608
  %v1610 = vsub.f32 1.0, %v1609
  %v1611 = vmul.f32 %v1608, %v1610
  %v1612 = vadd.f32 %v1608, %v1611
  %vm1613 = vweird.f32 %v1480
  %vm1614 = vweird.f32 %v1608
  %vm1615 = vmor %vm1613, %vm1614
  %v1616 = vsel %vm1615, %v1608, %v1612
  %v1617 = vand.u32 2147483647, %v1480
  %vm1618 = vcmp.eq.f32.partialorder %v1617, 8.507059e+37
  %v1619 = vand.u32 %v1480, 2147483648
  %v1620 = vor.u32 1.1754944e-38, %v1619
  %v1621 = vsel %vm1618, %v1620, %v1616
  %v1622 = vmul.f32 1.0, %v1621
  %v1623 = vrcp.pop %v1481
  %v1624 = vmul.f32 %v1481, %v1623
  %v1625 = vsub.f32 1.0, %v1624
  %v1626 = vmul.f32 %v1623, %v1625
  %v1627 = vadd.f32 %v1623, %v1626
  %vm1628 = vweird.f32 %v1481
  %vm1629 = vweird.f32 %v1623
  %vm1630 = vmor %vm1628, %vm1629
  %v1631 = vsel %vm1630, %v1623, %v1627
  %v1632 = vand.u32 2147483647, %v1481
  %vm1633 = vcmp.eq.f32.partialorder %v1632, 8.507059e+37
  %v1634 = vand.u32 %v1481, 2147483648
  %v1635 = vor.u32 1.1754944e-38, %v1634
  %v1636 = vsel %vm1633, %v1635, %v1631
  %v1637 = vmul.f32 1.0, %v1636
  %v1638 = vrcp.pop %v1482
  %v1639 = vmul.f32 %v1482, %v1638
  %v1640 = vsub.f32 1.0, %v1639
  %v1641 = vmul.f32 %v1638, %v1640
  %v1642 = vadd.f32 %v1638, %v1641
  %vm1643 = vweird.f32 %v1482
  %vm1644 = vweird.f32 %v1638
  %vm1645 = vmor %vm1643, %vm1644
  %v1646 = vsel %vm1645, %v1638, %v1642
  %v1647 = vand.u32 2147483647, %v1482
  %vm1648 = vcmp.eq.f32.partialorder %v1647, 8.507059e+37
  %v1649 = vand.u32 %v1482, 2147483648
  %v1650 = vor.u32 1.1754944e-38, %v1649
  %v1651 = vsel %vm1648, %v1650, %v1646
  %v1652 = vmul.f32 1.0, %v1651
  %v1653 = vrcp.pop %v1483
  %v1654 = vmul.f32 %v1483, %v1653
  %v1655 = vsub.f32 1.0, %v1654
  %v1656 = vmul.f32 %v1653, %v1655
  %v1657 = vadd.f32 %v1653, %v1656
  %vm1658 = vweird.f32 %v1483
  %vm1659 = vweird.f32 %v1653
  %vm1660 = vmor %vm1658, %vm1659
  %v1661 = vsel %vm1660, %v1653, %v1657
  %v1662 = vand.u32 2147483647, %v1483
  %vm1663 = vcmp.eq.f32.partialorder %v1662, 8.507059e+37
  %v1664 = vand.u32 %v1483, 2147483648
  %v1665 = vor.u32 1.1754944e-38, %v1664
  %v1666 = vsel %vm1663, %v1665, %v1661
  %v1667 = vmul.f32 1.0, %v1666
  %v1668 = vrcp.pop %v1484
  %v1669 = vmul.f32 %v1484, %v1668
  %v1670 = vsub.f32 1.0, %v1669
  %v1671 = vmul.f32 %v1668, %v1670
  %v1672 = vadd.f32 %v1668, %v1671
  %vm1673 = vweird.f32 %v1484
  %vm1674 = vweird.f32 %v1668
  %vm1675 = vmor %vm1673, %vm1674
  %v1676 = vsel %vm1675, %v1668, %v1672
  %v1677 = vand.u32 2147483647, %v1484
  %vm1678 = vcmp.eq.f32.partialorder %v1677, 8.507059e+37
  %v1679 = vand.u32 %v1484, 2147483648
  %v1680 = vor.u32 1.1754944e-38, %v1679
  %v1681 = vsel %vm1678, %v1680, %v1676
  %v1682 = vmul.f32 1.0, %v1681
  %v1683 = vrcp.pop %v1485
  %v1684 = vmul.f32 %v1485, %v1683
  %v1685 = vsub.f32 1.0, %v1684
  %v1686 = vmul.f32 %v1683, %v1685
  %v1687 = vadd.f32 %v1683, %v1686
  %vm1688 = vweird.f32 %v1485
  %vm1689 = vweird.f32 %v1683
  %vm1690 = vmor %vm1688, %vm1689
  %v1691 = vsel %vm1690, %v1683, %v1687
  %v1692 = vand.u32 2147483647, %v1485
  %vm1693 = vcmp.eq.f32.partialorder %v1692, 8.507059e+37
  %v1694 = vand.u32 %v1485, 2147483648
  %v1695 = vor.u32 1.1754944e-38, %v1694
  %v1696 = vsel %vm1693, %v1695, %v1691
  %v1697 = vmul.f32 1.0, %v1696
  %v1698 = vrcp.pop %v1486
  %v1699 = vmul.f32 %v1486, %v1698
  %v1700 = vsub.f32 1.0, %v1699
  %v1701 = vmul.f32 %v1698, %v1700
  %v1702 = vadd.f32 %v1698, %v1701
  %vm1703 = vweird.f32 %v1486
  %vm1704 = vweird.f32 %v1698
  %vm1705 = vmor %vm1703, %vm1704
  %v1706 = vsel %vm1705, %v1698, %v1702
  %v1707 = vand.u32 2147483647, %v1486
  %vm1708 = vcmp.eq.f32.partialorder %v1707, 8.507059e+37
  %v1709 = vand.u32 %v1486, 2147483648
  %v1710 = vor.u32 1.1754944e-38, %v1709
  %v1711 = vsel %vm1708, %v1710, %v1706
  %v1712 = vmul.f32 1.0, %v1711
  %v1713 = vrcp.pop %v1487
  %v1714 = vmul.f32 %v1487, %v1713
  %v1715 = vsub.f32 1.0, %v1714
  %v1716 = vmul.f32 %v1713, %v1715
  %v1717 = vadd.f32 %v1713, %v1716
  %vm1718 = vweird.f32 %v1487
  %vm1719 = vweird.f32 %v1713
  %vm1720 = vmor %vm1718, %vm1719
  %v1721 = vsel %vm1720, %v1713, %v1717
  %v1722 = vand.u32 2147483647, %v1487
  %vm1723 = vcmp.eq.f32.partialorder %v1722, 8.507059e+37
  %v1724 = vand.u32 %v1487, 2147483648
  %v1725 = vor.u32 1.1754944e-38, %v1724
  %v1726 = vsel %vm1723, %v1725, %v1721
  %v1727 = vmul.f32 1.0, %v1726
  %vm1728 = vcmask 7168
  %1729 = vst.msk [vmem:[%s7] sm:$0xff] %vm1728, %v1502
  %1730 = vst.msk [vmem:[%s7 + $0x8] sm:$0xff] %vm1728, %v1517
  %1731 = vst.msk [vmem:[%s7 + $0x10] sm:$0xff] %vm1728, %v1532
  %1732 = vst.msk [vmem:[%s7 + $0x18] sm:$0xff] %vm1728, %v1547
  %1733 = vst.msk [vmem:[%s7 + $0x20] sm:$0xff] %vm1728, %v1562
  %1734 = vst.msk [vmem:[%s7 + $0x28] sm:$0xff] %vm1728, %v1577
  %1735 = vst.msk [vmem:[%s7 + $0x30] sm:$0xff] %vm1728, %v1592
  %1736 = vst.msk [vmem:[%s7 + $0x38] sm:$0xff] %vm1728, %v1607
  %1737 = vst.msk [vmem:[%s7 + $0x40] sm:$0xff] %vm1728, %v1622
  %1738 = vst.msk [vmem:[%s7 + $0x48] sm:$0xff] %vm1728, %v1637
  %1739 = vst.msk [vmem:[%s7 + $0x50] sm:$0xff] %vm1728, %v1652
  %1740 = vst.msk [vmem:[%s7 + $0x58] sm:$0xff] %vm1728, %v1667
  %1741 = vst.msk [vmem:[%s7 + $0x60] sm:$0xff] %vm1728, %v1682
  %1742 = vst.msk [vmem:[%s7 + $0x68] sm:$0xff] %vm1728, %v1697
  %1743 = vst.msk [vmem:[%s7 + $0x70] sm:$0xff] %vm1728, %v1712
  %1744 = vst.msk [vmem:[%s7 + $0x78] sm:$0xff] %vm1728, %v1727
  // Predicated region
  $region30: #{nfm_forward.1} parent=0 // pred_check
    _
  $region31: #{nfm_forward.1} parent=0 // pred_check_branch
    %1746 = sbr.rel (0) target = $region33
  $region32: #{nfm_forward.1} parent=0 // pred_region
    _
  $region33: #{nfm_forward.1} parent=0 // pred_fallthru
    _
  // Predicated region
  $region34: #{nfm_forward.1} parent=0 // pred_check
    _
  $region35: #{nfm_forward.1} parent=0 // pred_check_branch
    %1748 = sbr.rel (0) target = $region37
  $region36: #{nfm_forward.1} parent=0 // pred_region
    _
  $region37: #{nfm_forward.1} parent=0 // pred_fallthru
    _

</llo_original>
